<compile_context>
chip_gen: v6e
topology: v6e:2x2x1
jax: 0.10.0
libtpu: 0.0.40
codegen_flags: <defaults>
</compile_context>

<pallas_src>
import functools
import math

import jax
import jax.numpy as jnp
from jax import lax
from jax.experimental import pallas as pl
from jax.experimental.pallas import tpu as pltpu


def _round_up(x, m):
    return ((x + m - 1) // m) * m


def _choose_tile_rows(OH, OW):
    """Output rows per grid step. TH*OW must be a multiple of 128 (lane-dense
    output block); fall back to TH == OH (full-dim last axis) if impossible."""
    m = 128 // math.gcd(OW, 128)
    if m > OH:
        return OH                       # tiny / odd shapes: single row block
    th = m
    # Grow while output lanes stay modest and we keep >= 8 row blocks.
    while (2 * th <= OH and 2 * th * OW <= 512
           and -(-OH // (2 * th)) >= 8):
        th *= 2
    return th


def _make_kernel(H, W, Wp, OW, KH, KW, SH, SW, PH, PW,
                 CIN, CIN_P, COUT, TH, QB, LROWS, LSCR, apply_relu):

    def kernel(x_ref, w_ref, scale_ref, bias_ref, o_ref, xrows_ref):
        # x_ref:     (1, CIN, H, W)        f32  raw NCHW image (resident across row blocks)
        # w_ref:     (KH*KW, COUT, CIN_P)  bf16 conv weights, tap-major (BN NOT folded in)
        # scale_ref: (COUT, 1)             f32  gamma / sqrt(running_var + eps)
        # bias_ref:  (COUT, 1)             f32  beta - running_mean * scale
        # o_ref:     (1, COUT, TH*OW)      f32  TH valid output rows, flattened on lanes
        # xrows_ref: (CIN_P, LSCR)         bf16 scratch: zero-padded rows for this block
        r = pl.program_id(1)
        pr0 = r * (TH * SH)              # first padded-image row needed by this block

        # ---- stage the LROWS padded rows this block needs (cast fused into store) ----
        if CIN_P > CIN:                  # zero the channel-padding rows (keep MXU clean)
            xrows_ref[CIN:CIN_P, :] = jnp.zeros((CIN_P - CIN, LSCR), jnp.bfloat16)
        for i in range(LROWS):           # LROWS = TH*SH + KH (small, static)
            h = pr0 + i - PH             # source image row (may be out of range)
            valid = jnp.logical_and(h >= 0, h < H)
            hc = jnp.clip(h, 0, H - 1)
            row = x_ref[0, :, hc, :]                         # (CIN, W) f32
            row = jnp.where(valid, row, 0.0).astype(jnp.bfloat16)
            off = i * Wp                                     # static lane offset
            if PW > 0:                   # fuse left/right zero padding with the store
                zpad = jnp.zeros((CIN, PW), jnp.bfloat16)
                xrows_ref[0:CIN, off:off + PW] = zpad
                xrows_ref[0:CIN, off + PW + W:off + Wp] = zpad
            xrows_ref[0:CIN, off + PW:off + PW + W] = row

        # ---- per-tap accumulated MXU matmuls (no materialized im2col) ----------------
        acc = None
        for kh in range(KH):
            for kw in range(KW):
                xs = xrows_ref[:, kh * Wp + kw:kh * Wp + kw + QB]   # (CIN_P, QB) bf16
                wt = w_ref[kh * KW + kw]                            # (COUT, CIN_P) bf16
                p = jnp.dot(wt, xs, preferred_element_type=jnp.float32)
                acc = p if acc is None else acc + p                 # (COUT, QB) f32

        # ---- BatchNorm (f32 scale/bias) + ReLU ---------------------------------------
        y = acc * scale_ref[...] + bias_ref[...]
        if apply_relu:
            y = jnp.maximum(y, 0.0)

        # ---- keep only valid output columns; single lane-dense store -----------------
        if SW == 1 and OW == SH * Wp:        # e.g. 1x1 conv, no padding: already dense
            yv = y
        else:
            parts = []
            for j in range(TH):
                c0 = j * SH * Wp
                if SW == 1:
                    parts.append(y[:, c0:c0 + OW])
                else:
                    # TODO(synk): SW > 1 still computes the strided-out columns on the
                    # MXU (garbage-column trick); only valid columns are written out.
                    parts.append(lax.slice(y, (0, c0),
                                           (COUT, c0 + (OW - 1) * SW + 1), (1, SW)))
            yv = jnp.concatenate(parts, axis=1)              # (COUT, TH*OW)
        o_ref[0] = yv.astype(o_ref.dtype)

    return kernel


def basic_conv(x_nchw, weight_oihw, gamma, beta, running_mean, running_var,
               *, stride=1, padding=0, dilation=1, groups=1, eps=1e-5,
               bn=True, relu=True):
    """BasicConv forward: Conv2d(bias=False) + BatchNorm2d(eval) + ReLU.

    x_nchw: (N, Cin, H, W); weight: (Cout, Cin, KH, KW).  Returns (N, Cout, OH, OW).
    """
    N, CIN, H, W = x_nchw.shape
    COUT, CIN_w, KH, KW = weight_oihw.shape
    # TODO(synk): dilation > 1 and groups > 1 (module defaults are 1) not implemented.
    assert dilation == 1, "dilation > 1 not supported"
    assert groups == 1 and CIN_w == CIN, "groups > 1 not supported"
    SH = SW = int(stride)
    PH = PW = int(padding)
    OH = (H + 2 * PH - KH) // SH + 1
    OW = (W + 2 * PW - KW) // SW + 1
    Wp = W + 2 * PW
    CIN_P = _round_up(CIN, 8)

    TH = _choose_tile_rows(OH, OW)           # output rows per grid step
    n_rb = pl.cdiv(OH, TH)
    QB = TH * SH * Wp                        # lanes computed per block (incl. garbage cols)
    LROWS = TH * SH + KH                     # padded rows staged per block
    LSCR = _round_up(LROWS * Wp, 128)

    # BatchNorm2d(eval): f32 per-channel scale/bias applied AFTER the matmul
    # (not folded into bf16 weights, to avoid precision loss for small running_var).
    if bn:
        scale = gamma.astype(jnp.float32) / jnp.sqrt(
            running_var.astype(jnp.float32) + eps)
        bias = beta.astype(jnp.float32) - running_mean.astype(jnp.float32) * scale
    else:
        scale = jnp.ones((COUT,), jnp.float32)
        bias = jnp.zeros((COUT,), jnp.float32)
    scale = scale.reshape(COUT, 1)
    bias = bias.reshape(COUT, 1)

    # (COUT, CIN, KH, KW) -> (KH*KW, COUT, CIN_P) bf16, tap-major, channel-padded.
    w3 = jnp.transpose(weight_oihw.astype(jnp.float32), (2, 3, 0, 1))
    w3 = w3.reshape(KH * KW, COUT, CIN)
    if CIN_P > CIN:
        w3 = jnp.pad(w3, ((0, 0), (0, 0), (0, CIN_P - CIN)))
    w3 = w3.astype(jnp.bfloat16)

    kernel = _make_kernel(H, W, Wp, OW, KH, KW, SH, SW, PH, PW,
                          CIN, CIN_P, COUT, TH, QB, LROWS, LSCR, relu)

    # Explicit VMEM limit from a per-step footprint estimate (2x headroom).
    need = (2 * CIN * H * W * 4              # x (double-buffered, resident per image)
            + 2 * KH * KW * COUT * CIN_P * 2  # weights
            + 4 * COUT * 4                    # scale + bias
            + 2 * COUT * TH * OW * 4          # output blocks
            + CIN_P * LSCR * 2                # row scratch
            + 2 * COUT * QB * 4               # f32 accumulator temporaries
            + 2 * CIN_P * QB * 2)             # tap operand temporaries
    vmem_limit = int(min(64 * 1024 * 1024, max(16 * 1024 * 1024, 2 * need)))

    out_flat = pl.pallas_call(
        kernel,
        out_shape=jax.ShapeDtypeStruct((N, COUT, OH * OW), jnp.float32),
        grid_spec=pltpu.PrefetchScalarGridSpec(
            num_scalar_prefetch=0,
            grid=(N, n_rb),
            in_specs=[
                pl.BlockSpec((1, CIN, H, W), lambda n, r: (n, 0, 0, 0)),
                pl.BlockSpec((KH * KW, COUT, CIN_P), lambda n, r: (0, 0, 0)),
                pl.BlockSpec((COUT, 1), lambda n, r: (0, 0)),
                pl.BlockSpec((COUT, 1), lambda n, r: (0, 0)),
            ],
            out_specs=pl.BlockSpec((1, COUT, TH * OW), lambda n, r: (n, 0, r)),
            scratch_shapes=[pltpu.VMEM((CIN_P, LSCR), jnp.bfloat16)],
        ),
        compiler_params=pltpu.CompilerParams(
            dimension_semantics=("parallel", "parallel"),
            vmem_limit_bytes=vmem_limit),
    )(x_nchw, w3, scale, bias)

    # Free (contiguous) reshape back to NCHW; no extra HBM pass.
    return out_flat.reshape(N, COUT, OH, OW)


def _reference(x_nchw, weight_oihw, gamma, beta, running_mean, running_var,
               *, stride=1, padding=0, eps=1e-5):
    """Pure-JAX reference (lax conv) for correctness check."""
    y = jax.lax.conv_general_dilated(
        x_nchw.astype(jnp.float32), weight_oihw.astype(jnp.float32),
        window_strides=(stride, stride),
        padding=((padding, padding), (padding, padding)),
        dimension_numbers=("NCHW", "OIHW", "NCHW"),
    )
    scale = gamma / jnp.sqrt(running_var + eps)
    bias = beta - running_mean * scale
    y = y * scale[None, :, None, None] + bias[None, :, None, None]
    return jnp.maximum(y, 0.0)


if __name__ == "__main__":
    # BasicConv(in_planes=4, out_planes=8, kernel_size=3, stride=1, padding=1)
    N, CIN, H, W = 2, 4, 16, 16
    COUT, K, STRIDE, PAD = 8, 3, 1, 1

    key = jax.random.PRNGKey(0)
    kx, kw, kg, kb, km, kv = jax.random.split(key, 6)

    x = jax.random.normal(kx, (N, CIN, H, W), dtype=jnp.float32)
    # Conv2d weight (bias=False), deterministic init.
    weight = 0.1 * jax.random.normal(kw, (COUT, CIN, K, K), dtype=jnp.float32)
    # BatchNorm2d parameters / running stats (eval semantics).
    gamma = 1.0 + 0.1 * jax.random.normal(kg, (COUT,), dtype=jnp.float32)
    beta = 0.1 * jax.random.normal(kb, (COUT,), dtype=jnp.float32)
    running_mean = 0.1 * jax.random.normal(km, (COUT,), dtype=jnp.float32)
    running_var = jnp.abs(jax.random.normal(kv, (COUT,), dtype=jnp.float32)) + 0.5

    fn = functools.partial(basic_conv, stride=STRIDE, padding=PAD)
    out = jax.block_until_ready(fn(x, weight, gamma, beta, running_mean, running_var))

    ref = _reference(x, weight, gamma, beta, running_mean, running_var,
                     stride=STRIDE, padding=PAD)
    assert out.shape == (N, COUT, H, W), out.shape
    # bf16 MXU operands -> slightly looser tolerance than the pure-f32 path.
    err = float(jnp.max(jnp.abs(out - ref)))
    assert jnp.allclose(out, ref, atol=2e-2, rtol=2e-2), err

    print("KERNEL_OK")
</pallas_src>

<mosaic_0001>
module attributes {stable_mosaic.version = 11 : i64} {
  func.func @kernel(%arg0: i32, %arg1: i32, %arg2: memref<1x4x16x16xf32, #tpu.memory_space<vmem>>, %arg3: memref<9x8x8xbf16, #tpu.memory_space<vmem>>, %arg4: memref<8x1xf32, #tpu.memory_space<vmem>>, %arg5: memref<8x1xf32, #tpu.memory_space<vmem>>, %arg6: memref<1x8x128xf32, #tpu.memory_space<vmem>>, %arg7: memref<8x256xbf16, #tpu.memory_space<vmem>>) attributes {dimension_semantics = [#tpu.dimension_semantics<parallel>, #tpu.dimension_semantics<parallel>], iteration_bounds = array<i64: 2, 2>, scalar_prefetch = 0 : i64, scratch_operands = 1 : i64, tpu.core_type = #tpu.core_type<tc>, window_params = [{transform_indices = @transform_0, window_bounds = array<i64: 1, 4, 16, 16>}, {pipeline_mode = #tpu.pipeline_mode<synchronous>, transform_indices = @transform_1, window_bounds = array<i64: 9, 8, 8>}, {pipeline_mode = #tpu.pipeline_mode<synchronous>, transform_indices = @transform_2, window_bounds = array<i64: 8, 1>}, {pipeline_mode = #tpu.pipeline_mode<synchronous>, transform_indices = @transform_3, window_bounds = array<i64: 8, 1>}, {transform_indices = @transform_4, window_bounds = array<i64: 1, 8, 128>}]} {
    %c8_i32 = arith.constant 8 : i32
    %0 = arith.muli %arg1, %c8_i32 : i32
    %cst = arith.constant 0.000000e+00 : bf16
    %1 = vector.broadcast %cst : bf16 to vector<4x256xbf16>
    %c4 = arith.constant 4 : index
    %c0 = arith.constant 0 : index
    %2 = vector.load %arg7[%c4, %c0] : memref<8x256xbf16, #tpu.memory_space<vmem>>, vector<4x256xbf16>
    tpu.vector_store %arg7[%c4, %c0], %1 {strides = array<i32>} : memref<8x256xbf16, #tpu.memory_space<vmem>>, vector<4x256xbf16>,
    %c0_i32 = arith.constant 0 : i32
    %3 = arith.addi %0, %c0_i32 : i32
    %c1_i32 = arith.constant 1 : i32
    %4 = arith.subi %3, %c1_i32 : i32
    %c0_i32_0 = arith.constant 0 : i32
    %5 = arith.cmpi sge, %4, %c0_i32_0 : i32
    %c16_i32 = arith.constant 16 : i32
    %6 = arith.cmpi slt, %4, %c16_i32 : i32
    %7 = arith.andi %5, %6 : i1
    %c0_i32_1 = arith.constant 0 : i32
    %c15_i32 = arith.constant 15 : i32
    %8 = arith.maxsi %c0_i32_1, %4 : i32
    %9 = arith.minsi %c15_i32, %8 : i32
    %c0_2 = arith.constant 0 : index
    %c0_3 = arith.constant 0 : index
    %10 = arith.index_cast %9 : i32 to index
    %c0_4 = arith.constant 0 : index
    %11 = vector.load %arg2[%c0_2, %c0_3, %10, %c0_4] : memref<1x4x16x16xf32, #tpu.memory_space<vmem>>, vector<1x4x1x16xf32>
    %12 = vector.shape_cast %11 : vector<1x4x1x16xf32> to vector<4x16xf32>
    %cst_5 = arith.constant 0.000000e+00 : f32
    %13 = vector.broadcast %cst_5 : f32 to vector<4x16xf32>
    %14 = arith.select %7, %12, %13 : vector<4x16xf32>
    %15 = arith.truncf %14 : vector<4x16xf32> to vector<4x16xbf16>
    %cst_6 = arith.constant 0.000000e+00 : bf16
    %16 = vector.broadcast %cst_6 : bf16 to vector<4x1xbf16>
    %c0_7 = arith.constant 0 : index
    %c0_8 = arith.constant 0 : index
    %17 = vector.load %arg7[%c0_7, %c0_8] : memref<8x256xbf16, #tpu.memory_space<vmem>>, vector<4x1xbf16>
    tpu.vector_store %arg7[%c0_7, %c0_8], %16 {strides = array<i32>} : memref<8x256xbf16, #tpu.memory_space<vmem>>, vector<4x1xbf16>,
    %c0_9 = arith.constant 0 : index
    %c17 = arith.constant 17 : index
    %18 = vector.load %arg7[%c0_9, %c17] : memref<8x256xbf16, #tpu.memory_space<vmem>>, vector<4x1xbf16>
    tpu.vector_store %arg7[%c0_9, %c17], %16 {strides = array<i32>} : memref<8x256xbf16, #tpu.memory_space<vmem>>, vector<4x1xbf16>,
    %c0_10 = arith.constant 0 : index
    %c1 = arith.constant 1 : index
    %19 = vector.load %arg7[%c0_10, %c1] : memref<8x256xbf16, #tpu.memory_space<vmem>>, vector<4x16xbf16>
    tpu.vector_store %arg7[%c0_10, %c1], %15 {strides = array<i32>} : memref<8x256xbf16, #tpu.memory_space<vmem>>, vector<4x16xbf16>,
    %c1_i32_11 = arith.constant 1 : i32
    %20 = arith.addi %0, %c1_i32_11 : i32
    %c1_i32_12 = arith.constant 1 : i32
    %21 = arith.subi %20, %c1_i32_12 : i32
    %c0_i32_13 = arith.constant 0 : i32
    %22 = arith.cmpi sge, %21, %c0_i32_13 : i32
    %c16_i32_14 = arith.constant 16 : i32
    %23 = arith.cmpi slt, %21, %c16_i32_14 : i32
    %24 = arith.andi %22, %23 : i1
    %c0_i32_15 = arith.constant 0 : i32
    %c15_i32_16 = arith.constant 15 : i32
    %25 = arith.maxsi %c0_i32_15, %21 : i32
    %26 = arith.minsi %c15_i32_16, %25 : i32
    %c0_17 = arith.constant 0 : index
    %c0_18 = arith.constant 0 : index
    %27 = arith.index_cast %26 : i32 to index
    %c0_19 = arith.constant 0 : index
    %28 = vector.load %arg2[%c0_17, %c0_18, %27, %c0_19] : memref<1x4x16x16xf32, #tpu.memory_space<vmem>>, vector<1x4x1x16xf32>
    %29 = vector.shape_cast %28 : vector<1x4x1x16xf32> to vector<4x16xf32>
    %cst_20 = arith.constant 0.000000e+00 : f32
    %30 = vector.broadcast %cst_20 : f32 to vector<4x16xf32>
    %31 = arith.select %24, %29, %30 : vector<4x16xf32>
    %32 = arith.truncf %31 : vector<4x16xf32> to vector<4x16xbf16>
    %cst_21 = arith.constant 0.000000e+00 : bf16
    %33 = vector.broadcast %cst_21 : bf16 to vector<4x1xbf16>
    %c0_22 = arith.constant 0 : index
    %c18 = arith.constant 18 : index
    %34 = vector.load %arg7[%c0_22, %c18] : memref<8x256xbf16, #tpu.memory_space<vmem>>, vector<4x1xbf16>
    tpu.vector_store %arg7[%c0_22, %c18], %33 {strides = array<i32>} : memref<8x256xbf16, #tpu.memory_space<vmem>>, vector<4x1xbf16>,
    %c0_23 = arith.constant 0 : index
    %c35 = arith.constant 35 : index
    %35 = vector.load %arg7[%c0_23, %c35] : memref<8x256xbf16, #tpu.memory_space<vmem>>, vector<4x1xbf16>
    tpu.vector_store %arg7[%c0_23, %c35], %33 {strides = array<i32>} : memref<8x256xbf16, #tpu.memory_space<vmem>>, vector<4x1xbf16>,
    %c0_24 = arith.constant 0 : index
    %c19 = arith.constant 19 : index
    %36 = vector.load %arg7[%c0_24, %c19] : memref<8x256xbf16, #tpu.memory_space<vmem>>, vector<4x16xbf16>
    tpu.vector_store %arg7[%c0_24, %c19], %32 {strides = array<i32>} : memref<8x256xbf16, #tpu.memory_space<vmem>>, vector<4x16xbf16>,
    %c2_i32 = arith.constant 2 : i32
    %37 = arith.addi %0, %c2_i32 : i32
    %c1_i32_25 = arith.constant 1 : i32
    %38 = arith.subi %37, %c1_i32_25 : i32
    %c0_i32_26 = arith.constant 0 : i32
    %39 = arith.cmpi sge, %38, %c0_i32_26 : i32
    %c16_i32_27 = arith.constant 16 : i32
    %40 = arith.cmpi slt, %38, %c16_i32_27 : i32
    %41 = arith.andi %39, %40 : i1
    %c0_i32_28 = arith.constant 0 : i32
    %c15_i32_29 = arith.constant 15 : i32
    %42 = arith.maxsi %c0_i32_28, %38 : i32
    %43 = arith.minsi %c15_i32_29, %42 : i32
    %c0_30 = arith.constant 0 : index
    %c0_31 = arith.constant 0 : index
    %44 = arith.index_cast %43 : i32 to index
    %c0_32 = arith.constant 0 : index
    %45 = vector.load %arg2[%c0_30, %c0_31, %44, %c0_32] : memref<1x4x16x16xf32, #tpu.memory_space<vmem>>, vector<1x4x1x16xf32>
    %46 = vector.shape_cast %45 : vector<1x4x1x16xf32> to vector<4x16xf32>
    %cst_33 = arith.constant 0.000000e+00 : f32
    %47 = vector.broadcast %cst_33 : f32 to vector<4x16xf32>
    %48 = arith.select %41, %46, %47 : vector<4x16xf32>
    %49 = arith.truncf %48 : vector<4x16xf32> to vector<4x16xbf16>
    %cst_34 = arith.constant 0.000000e+00 : bf16
    %50 = vector.broadcast %cst_34 : bf16 to vector<4x1xbf16>
    %c0_35 = arith.constant 0 : index
    %c36 = arith.constant 36 : index
    %51 = vector.load %arg7[%c0_35, %c36] : memref<8x256xbf16, #tpu.memory_space<vmem>>, vector<4x1xbf16>
    tpu.vector_store %arg7[%c0_35, %c36], %50 {strides = array<i32>} : memref<8x256xbf16, #tpu.memory_space<vmem>>, vector<4x1xbf16>,
    %c0_36 = arith.constant 0 : index
    %c53 = arith.constant 53 : index
    %52 = vector.load %arg7[%c0_36, %c53] : memref<8x256xbf16, #tpu.memory_space<vmem>>, vector<4x1xbf16>
    tpu.vector_store %arg7[%c0_36, %c53], %50 {strides = array<i32>} : memref<8x256xbf16, #tpu.memory_space<vmem>>, vector<4x1xbf16>,
    %c0_37 = arith.constant 0 : index
    %c37 = arith.constant 37 : index
    %53 = vector.load %arg7[%c0_37, %c37] : memref<8x256xbf16, #tpu.memory_space<vmem>>, vector<4x16xbf16>
    tpu.vector_store %arg7[%c0_37, %c37], %49 {strides = array<i32>} : memref<8x256xbf16, #tpu.memory_space<vmem>>, vector<4x16xbf16>,
    %c3_i32 = arith.constant 3 : i32
    %54 = arith.addi %0, %c3_i32 : i32
    %c1_i32_38 = arith.constant 1 : i32
    %55 = arith.subi %54, %c1_i32_38 : i32
    %c0_i32_39 = arith.constant 0 : i32
    %56 = arith.cmpi sge, %55, %c0_i32_39 : i32
    %c16_i32_40 = arith.constant 16 : i32
    %57 = arith.cmpi slt, %55, %c16_i32_40 : i32
    %58 = arith.andi %56, %57 : i1
    %c0_i32_41 = arith.constant 0 : i32
    %c15_i32_42 = arith.constant 15 : i32
    %59 = arith.maxsi %c0_i32_41, %55 : i32
    %60 = arith.minsi %c15_i32_42, %59 : i32
    %c0_43 = arith.constant 0 : index
    %c0_44 = arith.constant 0 : index
    %61 = arith.index_cast %60 : i32 to index
    %c0_45 = arith.constant 0 : index
    %62 = vector.load %arg2[%c0_43, %c0_44, %61, %c0_45] : memref<1x4x16x16xf32, #tpu.memory_space<vmem>>, vector<1x4x1x16xf32>
    %63 = vector.shape_cast %62 : vector<1x4x1x16xf32> to vector<4x16xf32>
    %cst_46 = arith.constant 0.000000e+00 : f32
    %64 = vector.broadcast %cst_46 : f32 to vector<4x16xf32>
    %65 = arith.select %58, %63, %64 : vector<4x16xf32>
    %66 = arith.truncf %65 : vector<4x16xf32> to vector<4x16xbf16>
    %cst_47 = arith.constant 0.000000e+00 : bf16
    %67 = vector.broadcast %cst_47 : bf16 to vector<4x1xbf16>
    %c0_48 = arith.constant 0 : index
    %c54 = arith.constant 54 : index
    %68 = vector.load %arg7[%c0_48, %c54] : memref<8x256xbf16, #tpu.memory_space<vmem>>, vector<4x1xbf16>
    tpu.vector_store %arg7[%c0_48, %c54], %67 {strides = array<i32>} : memref<8x256xbf16, #tpu.memory_space<vmem>>, vector<4x1xbf16>,
    %c0_49 = arith.constant 0 : index
    %c71 = arith.constant 71 : index
    %69 = vector.load %arg7[%c0_49, %c71] : memref<8x256xbf16, #tpu.memory_space<vmem>>, vector<4x1xbf16>
    tpu.vector_store %arg7[%c0_49, %c71], %67 {strides = array<i32>} : memref<8x256xbf16, #tpu.memory_space<vmem>>, vector<4x1xbf16>,
    %c0_50 = arith.constant 0 : index
    %c55 = arith.constant 55 : index
    %70 = vector.load %arg7[%c0_50, %c55] : memref<8x256xbf16, #tpu.memory_space<vmem>>, vector<4x16xbf16>
    tpu.vector_store %arg7[%c0_50, %c55], %66 {strides = array<i32>} : memref<8x256xbf16, #tpu.memory_space<vmem>>, vector<4x16xbf16>,
    %c4_i32 = arith.constant 4 : i32
    %71 = arith.addi %0, %c4_i32 : i32
    %c1_i32_51 = arith.constant 1 : i32
    %72 = arith.subi %71, %c1_i32_51 : i32
    %c0_i32_52 = arith.constant 0 : i32
    %73 = arith.cmpi sge, %72, %c0_i32_52 : i32
    %c16_i32_53 = arith.constant 16 : i32
    %74 = arith.cmpi slt, %72, %c16_i32_53 : i32
    %75 = arith.andi %73, %74 : i1
    %c0_i32_54 = arith.constant 0 : i32
    %c15_i32_55 = arith.constant 15 : i32
    %76 = arith.maxsi %c0_i32_54, %72 : i32
    %77 = arith.minsi %c15_i32_55, %76 : i32
    %c0_56 = arith.constant 0 : index
    %c0_57 = arith.constant 0 : index
    %78 = arith.index_cast %77 : i32 to index
    %c0_58 = arith.constant 0 : index
    %79 = vector.load %arg2[%c0_56, %c0_57, %78, %c0_58] : memref<1x4x16x16xf32, #tpu.memory_space<vmem>>, vector<1x4x1x16xf32>
    %80 = vector.shape_cast %79 : vector<1x4x1x16xf32> to vector<4x16xf32>
    %cst_59 = arith.constant 0.000000e+00 : f32
    %81 = vector.broadcast %cst_59 : f32 to vector<4x16xf32>
    %82 = arith.select %75, %80, %81 : vector<4x16xf32>
    %83 = arith.truncf %82 : vector<4x16xf32> to vector<4x16xbf16>
    %cst_60 = arith.constant 0.000000e+00 : bf16
    %84 = vector.broadcast %cst_60 : bf16 to vector<4x1xbf16>
    %c0_61 = arith.constant 0 : index
    %c72 = arith.constant 72 : index
    %85 = vector.load %arg7[%c0_61, %c72] : memref<8x256xbf16, #tpu.memory_space<vmem>>, vector<4x1xbf16>
    tpu.vector_store %arg7[%c0_61, %c72], %84 {strides = array<i32>} : memref<8x256xbf16, #tpu.memory_space<vmem>>, vector<4x1xbf16>,
    %c0_62 = arith.constant 0 : index
    %c89 = arith.constant 89 : index
    %86 = vector.load %arg7[%c0_62, %c89] : memref<8x256xbf16, #tpu.memory_space<vmem>>, vector<4x1xbf16>
    tpu.vector_store %arg7[%c0_62, %c89], %84 {strides = array<i32>} : memref<8x256xbf16, #tpu.memory_space<vmem>>, vector<4x1xbf16>,
    %c0_63 = arith.constant 0 : index
    %c73 = arith.constant 73 : index
    %87 = vector.load %arg7[%c0_63, %c73] : memref<8x256xbf16, #tpu.memory_space<vmem>>, vector<4x16xbf16>
    tpu.vector_store %arg7[%c0_63, %c73], %83 {strides = array<i32>} : memref<8x256xbf16, #tpu.memory_space<vmem>>, vector<4x16xbf16>,
    %c5_i32 = arith.constant 5 : i32
    %88 = arith.addi %0, %c5_i32 : i32
    %c1_i32_64 = arith.constant 1 : i32
    %89 = arith.subi %88, %c1_i32_64 : i32
    %c0_i32_65 = arith.constant 0 : i32
    %90 = arith.cmpi sge, %89, %c0_i32_65 : i32
    %c16_i32_66 = arith.constant 16 : i32
    %91 = arith.cmpi slt, %89, %c16_i32_66 : i32
    %92 = arith.andi %90, %91 : i1
    %c0_i32_67 = arith.constant 0 : i32
    %c15_i32_68 = arith.constant 15 : i32
    %93 = arith.maxsi %c0_i32_67, %89 : i32
    %94 = arith.minsi %c15_i32_68, %93 : i32
    %c0_69 = arith.constant 0 : index
    %c0_70 = arith.constant 0 : index
    %95 = arith.index_cast %94 : i32 to index
    %c0_71 = arith.constant 0 : index
    %96 = vector.load %arg2[%c0_69, %c0_70, %95, %c0_71] : memref<1x4x16x16xf32, #tpu.memory_space<vmem>>, vector<1x4x1x16xf32>
    %97 = vector.shape_cast %96 : vector<1x4x1x16xf32> to vector<4x16xf32>
    %cst_72 = arith.constant 0.000000e+00 : f32
    %98 = vector.broadcast %cst_72 : f32 to vector<4x16xf32>
    %99 = arith.select %92, %97, %98 : vector<4x16xf32>
    %100 = arith.truncf %99 : vector<4x16xf32> to vector<4x16xbf16>
    %cst_73 = arith.constant 0.000000e+00 : bf16
    %101 = vector.broadcast %cst_73 : bf16 to vector<4x1xbf16>
    %c0_74 = arith.constant 0 : index
    %c90 = arith.constant 90 : index
    %102 = vector.load %arg7[%c0_74, %c90] : memref<8x256xbf16, #tpu.memory_space<vmem>>, vector<4x1xbf16>
    tpu.vector_store %arg7[%c0_74, %c90], %101 {strides = array<i32>} : memref<8x256xbf16, #tpu.memory_space<vmem>>, vector<4x1xbf16>,
    %c0_75 = arith.constant 0 : index
    %c107 = arith.constant 107 : index
    %103 = vector.load %arg7[%c0_75, %c107] : memref<8x256xbf16, #tpu.memory_space<vmem>>, vector<4x1xbf16>
    tpu.vector_store %arg7[%c0_75, %c107], %101 {strides = array<i32>} : memref<8x256xbf16, #tpu.memory_space<vmem>>, vector<4x1xbf16>,
    %c0_76 = arith.constant 0 : index
    %c91 = arith.constant 91 : index
    %104 = vector.load %arg7[%c0_76, %c91] : memref<8x256xbf16, #tpu.memory_space<vmem>>, vector<4x16xbf16>
    tpu.vector_store %arg7[%c0_76, %c91], %100 {strides = array<i32>} : memref<8x256xbf16, #tpu.memory_space<vmem>>, vector<4x16xbf16>,
    %c6_i32 = arith.constant 6 : i32
    %105 = arith.addi %0, %c6_i32 : i32
    %c1_i32_77 = arith.constant 1 : i32
    %106 = arith.subi %105, %c1_i32_77 : i32
    %c0_i32_78 = arith.constant 0 : i32
    %107 = arith.cmpi sge, %106, %c0_i32_78 : i32
    %c16_i32_79 = arith.constant 16 : i32
    %108 = arith.cmpi slt, %106, %c16_i32_79 : i32
    %109 = arith.andi %107, %108 : i1
    %c0_i32_80 = arith.constant 0 : i32
    %c15_i32_81 = arith.constant 15 : i32
    %110 = arith.maxsi %c0_i32_80, %106 : i32
    %111 = arith.minsi %c15_i32_81, %110 : i32
    %c0_82 = arith.constant 0 : index
    %c0_83 = arith.constant 0 : index
    %112 = arith.index_cast %111 : i32 to index
    %c0_84 = arith.constant 0 : index
    %113 = vector.load %arg2[%c0_82, %c0_83, %112, %c0_84] : memref<1x4x16x16xf32, #tpu.memory_space<vmem>>, vector<1x4x1x16xf32>
    %114 = vector.shape_cast %113 : vector<1x4x1x16xf32> to vector<4x16xf32>
    %cst_85 = arith.constant 0.000000e+00 : f32
    %115 = vector.broadcast %cst_85 : f32 to vector<4x16xf32>
    %116 = arith.select %109, %114, %115 : vector<4x16xf32>
    %117 = arith.truncf %116 : vector<4x16xf32> to vector<4x16xbf16>
    %cst_86 = arith.constant 0.000000e+00 : bf16
    %118 = vector.broadcast %cst_86 : bf16 to vector<4x1xbf16>
    %c0_87 = arith.constant 0 : index
    %c108 = arith.constant 108 : index
    %119 = vector.load %arg7[%c0_87, %c108] : memref<8x256xbf16, #tpu.memory_space<vmem>>, vector<4x1xbf16>
    tpu.vector_store %arg7[%c0_87, %c108], %118 {strides = array<i32>} : memref<8x256xbf16, #tpu.memory_space<vmem>>, vector<4x1xbf16>,
    %c0_88 = arith.constant 0 : index
    %c125 = arith.constant 125 : index
    %120 = vector.load %arg7[%c0_88, %c125] : memref<8x256xbf16, #tpu.memory_space<vmem>>, vector<4x1xbf16>
    tpu.vector_store %arg7[%c0_88, %c125], %118 {strides = array<i32>} : memref<8x256xbf16, #tpu.memory_space<vmem>>, vector<4x1xbf16>,
    %c0_89 = arith.constant 0 : index
    %c109 = arith.constant 109 : index
    %121 = vector.load %arg7[%c0_89, %c109] : memref<8x256xbf16, #tpu.memory_space<vmem>>, vector<4x16xbf16>
    tpu.vector_store %arg7[%c0_89, %c109], %117 {strides = array<i32>} : memref<8x256xbf16, #tpu.memory_space<vmem>>, vector<4x16xbf16>,
    %c7_i32 = arith.constant 7 : i32
    %122 = arith.addi %0, %c7_i32 : i32
    %c1_i32_90 = arith.constant 1 : i32
    %123 = arith.subi %122, %c1_i32_90 : i32
    %c0_i32_91 = arith.constant 0 : i32
    %124 = arith.cmpi sge, %123, %c0_i32_91 : i32
    %c16_i32_92 = arith.constant 16 : i32
    %125 = arith.cmpi slt, %123, %c16_i32_92 : i32
    %126 = arith.andi %124, %125 : i1
    %c0_i32_93 = arith.constant 0 : i32
    %c15_i32_94 = arith.constant 15 : i32
    %127 = arith.maxsi %c0_i32_93, %123 : i32
    %128 = arith.minsi %c15_i32_94, %127 : i32
    %c0_95 = arith.constant 0 : index
    %c0_96 = arith.constant 0 : index
    %129 = arith.index_cast %128 : i32 to index
    %c0_97 = arith.constant 0 : index
    %130 = vector.load %arg2[%c0_95, %c0_96, %129, %c0_97] : memref<1x4x16x16xf32, #tpu.memory_space<vmem>>, vector<1x4x1x16xf32>
    %131 = vector.shape_cast %130 : vector<1x4x1x16xf32> to vector<4x16xf32>
    %cst_98 = arith.constant 0.000000e+00 : f32
    %132 = vector.broadcast %cst_98 : f32 to vector<4x16xf32>
    %133 = arith.select %126, %131, %132 : vector<4x16xf32>
    %134 = arith.truncf %133 : vector<4x16xf32> to vector<4x16xbf16>
    %cst_99 = arith.constant 0.000000e+00 : bf16
    %135 = vector.broadcast %cst_99 : bf16 to vector<4x1xbf16>
    %c0_100 = arith.constant 0 : index
    %c126 = arith.constant 126 : index
    %136 = vector.load %arg7[%c0_100, %c126] : memref<8x256xbf16, #tpu.memory_space<vmem>>, vector<4x1xbf16>
    tpu.vector_store %arg7[%c0_100, %c126], %135 {strides = array<i32>} : memref<8x256xbf16, #tpu.memory_space<vmem>>, vector<4x1xbf16>,
    %c0_101 = arith.constant 0 : index
    %c143 = arith.constant 143 : index
    %137 = vector.load %arg7[%c0_101, %c143] : memref<8x256xbf16, #tpu.memory_space<vmem>>, vector<4x1xbf16>
    tpu.vector_store %arg7[%c0_101, %c143], %135 {strides = array<i32>} : memref<8x256xbf16, #tpu.memory_space<vmem>>, vector<4x1xbf16>,
    %c0_102 = arith.constant 0 : index
    %c127 = arith.constant 127 : index
    %138 = vector.load %arg7[%c0_102, %c127] : memref<8x256xbf16, #tpu.memory_space<vmem>>, vector<4x16xbf16>
    tpu.vector_store %arg7[%c0_102, %c127], %134 {strides = array<i32>} : memref<8x256xbf16, #tpu.memory_space<vmem>>, vector<4x16xbf16>,
    %c8_i32_103 = arith.constant 8 : i32
    %139 = arith.addi %0, %c8_i32_103 : i32
    %c1_i32_104 = arith.constant 1 : i32
    %140 = arith.subi %139, %c1_i32_104 : i32
    %c0_i32_105 = arith.constant 0 : i32
    %141 = arith.cmpi sge, %140, %c0_i32_105 : i32
    %c16_i32_106 = arith.constant 16 : i32
    %142 = arith.cmpi slt, %140, %c16_i32_106 : i32
    %143 = arith.andi %141, %142 : i1
    %c0_i32_107 = arith.constant 0 : i32
    %c15_i32_108 = arith.constant 15 : i32
    %144 = arith.maxsi %c0_i32_107, %140 : i32
    %145 = arith.minsi %c15_i32_108, %144 : i32
    %c0_109 = arith.constant 0 : index
    %c0_110 = arith.constant 0 : index
    %146 = arith.index_cast %145 : i32 to index
    %c0_111 = arith.constant 0 : index
    %147 = vector.load %arg2[%c0_109, %c0_110, %146, %c0_111] : memref<1x4x16x16xf32, #tpu.memory_space<vmem>>, vector<1x4x1x16xf32>
    %148 = vector.shape_cast %147 : vector<1x4x1x16xf32> to vector<4x16xf32>
    %cst_112 = arith.constant 0.000000e+00 : f32
    %149 = vector.broadcast %cst_112 : f32 to vector<4x16xf32>
    %150 = arith.select %143, %148, %149 : vector<4x16xf32>
    %151 = arith.truncf %150 : vector<4x16xf32> to vector<4x16xbf16>
    %cst_113 = arith.constant 0.000000e+00 : bf16
    %152 = vector.broadcast %cst_113 : bf16 to vector<4x1xbf16>
    %c0_114 = arith.constant 0 : index
    %c144 = arith.constant 144 : index
    %153 = vector.load %arg7[%c0_114, %c144] : memref<8x256xbf16, #tpu.memory_space<vmem>>, vector<4x1xbf16>
    tpu.vector_store %arg7[%c0_114, %c144], %152 {strides = array<i32>} : memref<8x256xbf16, #tpu.memory_space<vmem>>, vector<4x1xbf16>,
    %c0_115 = arith.constant 0 : index
    %c161 = arith.constant 161 : index
    %154 = vector.load %arg7[%c0_115, %c161] : memref<8x256xbf16, #tpu.memory_space<vmem>>, vector<4x1xbf16>
    tpu.vector_store %arg7[%c0_115, %c161], %152 {strides = array<i32>} : memref<8x256xbf16, #tpu.memory_space<vmem>>, vector<4x1xbf16>,
    %c0_116 = arith.constant 0 : index
    %c145 = arith.constant 145 : index
    %155 = vector.load %arg7[%c0_116, %c145] : memref<8x256xbf16, #tpu.memory_space<vmem>>, vector<4x16xbf16>
    tpu.vector_store %arg7[%c0_116, %c145], %151 {strides = array<i32>} : memref<8x256xbf16, #tpu.memory_space<vmem>>, vector<4x16xbf16>,
    %c9_i32 = arith.constant 9 : i32
    %156 = arith.addi %0, %c9_i32 : i32
    %c1_i32_117 = arith.constant 1 : i32
    %157 = arith.subi %156, %c1_i32_117 : i32
    %c0_i32_118 = arith.constant 0 : i32
    %158 = arith.cmpi sge, %157, %c0_i32_118 : i32
    %c16_i32_119 = arith.constant 16 : i32
    %159 = arith.cmpi slt, %157, %c16_i32_119 : i32
    %160 = arith.andi %158, %159 : i1
    %c0_i32_120 = arith.constant 0 : i32
    %c15_i32_121 = arith.constant 15 : i32
    %161 = arith.maxsi %c0_i32_120, %157 : i32
    %162 = arith.minsi %c15_i32_121, %161 : i32
    %c0_122 = arith.constant 0 : index
    %c0_123 = arith.constant 0 : index
    %163 = arith.index_cast %162 : i32 to index
    %c0_124 = arith.constant 0 : index
    %164 = vector.load %arg2[%c0_122, %c0_123, %163, %c0_124] : memref<1x4x16x16xf32, #tpu.memory_space<vmem>>, vector<1x4x1x16xf32>
    %165 = vector.shape_cast %164 : vector<1x4x1x16xf32> to vector<4x16xf32>
    %cst_125 = arith.constant 0.000000e+00 : f32
    %166 = vector.broadcast %cst_125 : f32 to vector<4x16xf32>
    %167 = arith.select %160, %165, %166 : vector<4x16xf32>
    %168 = arith.truncf %167 : vector<4x16xf32> to vector<4x16xbf16>
    %cst_126 = arith.constant 0.000000e+00 : bf16
    %169 = vector.broadcast %cst_126 : bf16 to vector<4x1xbf16>
    %c0_127 = arith.constant 0 : index
    %c162 = arith.constant 162 : index
    %170 = vector.load %arg7[%c0_127, %c162] : memref<8x256xbf16, #tpu.memory_space<vmem>>, vector<4x1xbf16>
    tpu.vector_store %arg7[%c0_127, %c162], %169 {strides = array<i32>} : memref<8x256xbf16, #tpu.memory_space<vmem>>, vector<4x1xbf16>,
    %c0_128 = arith.constant 0 : index
    %c179 = arith.constant 179 : index
    %171 = vector.load %arg7[%c0_128, %c179] : memref<8x256xbf16, #tpu.memory_space<vmem>>, vector<4x1xbf16>
    tpu.vector_store %arg7[%c0_128, %c179], %169 {strides = array<i32>} : memref<8x256xbf16, #tpu.memory_space<vmem>>, vector<4x1xbf16>,
    %c0_129 = arith.constant 0 : index
    %c163 = arith.constant 163 : index
    %172 = vector.load %arg7[%c0_129, %c163] : memref<8x256xbf16, #tpu.memory_space<vmem>>, vector<4x16xbf16>
    tpu.vector_store %arg7[%c0_129, %c163], %168 {strides = array<i32>} : memref<8x256xbf16, #tpu.memory_space<vmem>>, vector<4x16xbf16>,
    %c10_i32 = arith.constant 10 : i32
    %173 = arith.addi %0, %c10_i32 : i32
    %c1_i32_130 = arith.constant 1 : i32
    %174 = arith.subi %173, %c1_i32_130 : i32
    %c0_i32_131 = arith.constant 0 : i32
    %175 = arith.cmpi sge, %174, %c0_i32_131 : i32
    %c16_i32_132 = arith.constant 16 : i32
    %176 = arith.cmpi slt, %174, %c16_i32_132 : i32
    %177 = arith.andi %175, %176 : i1
    %c0_i32_133 = arith.constant 0 : i32
    %c15_i32_134 = arith.constant 15 : i32
    %178 = arith.maxsi %c0_i32_133, %174 : i32
    %179 = arith.minsi %c15_i32_134, %178 : i32
    %c0_135 = arith.constant 0 : index
    %c0_136 = arith.constant 0 : index
    %180 = arith.index_cast %179 : i32 to index
    %c0_137 = arith.constant 0 : index
    %181 = vector.load %arg2[%c0_135, %c0_136, %180, %c0_137] : memref<1x4x16x16xf32, #tpu.memory_space<vmem>>, vector<1x4x1x16xf32>
    %182 = vector.shape_cast %181 : vector<1x4x1x16xf32> to vector<4x16xf32>
    %cst_138 = arith.constant 0.000000e+00 : f32
    %183 = vector.broadcast %cst_138 : f32 to vector<4x16xf32>
    %184 = arith.select %177, %182, %183 : vector<4x16xf32>
    %185 = arith.truncf %184 : vector<4x16xf32> to vector<4x16xbf16>
    %cst_139 = arith.constant 0.000000e+00 : bf16
    %186 = vector.broadcast %cst_139 : bf16 to vector<4x1xbf16>
    %c0_140 = arith.constant 0 : index
    %c180 = arith.constant 180 : index
    %187 = vector.load %arg7[%c0_140, %c180] : memref<8x256xbf16, #tpu.memory_space<vmem>>, vector<4x1xbf16>
    tpu.vector_store %arg7[%c0_140, %c180], %186 {strides = array<i32>} : memref<8x256xbf16, #tpu.memory_space<vmem>>, vector<4x1xbf16>,
    %c0_141 = arith.constant 0 : index
    %c197 = arith.constant 197 : index
    %188 = vector.load %arg7[%c0_141, %c197] : memref<8x256xbf16, #tpu.memory_space<vmem>>, vector<4x1xbf16>
    tpu.vector_store %arg7[%c0_141, %c197], %186 {strides = array<i32>} : memref<8x256xbf16, #tpu.memory_space<vmem>>, vector<4x1xbf16>,
    %c0_142 = arith.constant 0 : index
    %c181 = arith.constant 181 : index
    %189 = vector.load %arg7[%c0_142, %c181] : memref<8x256xbf16, #tpu.memory_space<vmem>>, vector<4x16xbf16>
    tpu.vector_store %arg7[%c0_142, %c181], %185 {strides = array<i32>} : memref<8x256xbf16, #tpu.memory_space<vmem>>, vector<4x16xbf16>,
    %c0_143 = arith.constant 0 : index
    %c0_144 = arith.constant 0 : index
    %190 = vector.load %arg7[%c0_143, %c0_144] : memref<8x256xbf16, #tpu.memory_space<vmem>>, vector<8x144xbf16>
    %c0_145 = arith.constant 0 : index
    %c0_146 = arith.constant 0 : index
    %c0_147 = arith.constant 0 : index
    %191 = vector.load %arg3[%c0_145, %c0_146, %c0_147] : memref<9x8x8xbf16, #tpu.memory_space<vmem>>, vector<1x8x8xbf16>
    %192 = vector.shape_cast %191 : vector<1x8x8xbf16> to vector<8x8xbf16>
    %cst_148 = arith.constant dense<0.000000e+00> : vector<8x144xf32>
    %193 = tpu.matmul %192, %190, %cst_148 {dimension_numbers = #tpu.dot_dimension_numbers<[1], [0], [0], [1], [0, 0, 1, 1], [], []>} : vector<8x8xbf16>, vector<8x144xbf16>, vector<8x144xf32> -> vector<8x144xf32>
    %c0_149 = arith.constant 0 : index
    %c1_150 = arith.constant 1 : index
    %194 = vector.load %arg7[%c0_149, %c1_150] : memref<8x256xbf16, #tpu.memory_space<vmem>>, vector<8x144xbf16>
    %c1_151 = arith.constant 1 : index
    %c0_152 = arith.constant 0 : index
    %c0_153 = arith.constant 0 : index
    %195 = vector.load %arg3[%c1_151, %c0_152, %c0_153] : memref<9x8x8xbf16, #tpu.memory_space<vmem>>, vector<1x8x8xbf16>
    %196 = vector.shape_cast %195 : vector<1x8x8xbf16> to vector<8x8xbf16>
    %cst_154 = arith.constant dense<0.000000e+00> : vector<8x144xf32>
    %197 = tpu.matmul %196, %194, %cst_154 {dimension_numbers = #tpu.dot_dimension_numbers<[1], [0], [0], [1], [0, 0, 1, 1], [], []>} : vector<8x8xbf16>, vector<8x144xbf16>, vector<8x144xf32> -> vector<8x144xf32>
    %198 = arith.addf %193, %197 : vector<8x144xf32>
    %c0_155 = arith.constant 0 : index
    %c2 = arith.constant 2 : index
    %199 = vector.load %arg7[%c0_155, %c2] : memref<8x256xbf16, #tpu.memory_space<vmem>>, vector<8x144xbf16>
    %c2_156 = arith.constant 2 : index
    %c0_157 = arith.constant 0 : index
    %c0_158 = arith.constant 0 : index
    %200 = vector.load %arg3[%c2_156, %c0_157, %c0_158] : memref<9x8x8xbf16, #tpu.memory_space<vmem>>, vector<1x8x8xbf16>
    %201 = vector.shape_cast %200 : vector<1x8x8xbf16> to vector<8x8xbf16>
    %cst_159 = arith.constant dense<0.000000e+00> : vector<8x144xf32>
    %202 = tpu.matmul %201, %199, %cst_159 {dimension_numbers = #tpu.dot_dimension_numbers<[1], [0], [0], [1], [0, 0, 1, 1], [], []>} : vector<8x8xbf16>, vector<8x144xbf16>, vector<8x144xf32> -> vector<8x144xf32>
    %203 = arith.addf %198, %202 : vector<8x144xf32>
    %c0_160 = arith.constant 0 : index
    %c18_161 = arith.constant 18 : index
    %204 = vector.load %arg7[%c0_160, %c18_161] : memref<8x256xbf16, #tpu.memory_space<vmem>>, vector<8x144xbf16>
    %c3 = arith.constant 3 : index
    %c0_162 = arith.constant 0 : index
    %c0_163 = arith.constant 0 : index
    %205 = vector.load %arg3[%c3, %c0_162, %c0_163] : memref<9x8x8xbf16, #tpu.memory_space<vmem>>, vector<1x8x8xbf16>
    %206 = vector.shape_cast %205 : vector<1x8x8xbf16> to vector<8x8xbf16>
    %cst_164 = arith.constant dense<0.000000e+00> : vector<8x144xf32>
    %207 = tpu.matmul %206, %204, %cst_164 {dimension_numbers = #tpu.dot_dimension_numbers<[1], [0], [0], [1], [0, 0, 1, 1], [], []>} : vector<8x8xbf16>, vector<8x144xbf16>, vector<8x144xf32> -> vector<8x144xf32>
    %208 = arith.addf %203, %207 : vector<8x144xf32>
    %c0_165 = arith.constant 0 : index
    %c19_166 = arith.constant 19 : index
    %209 = vector.load %arg7[%c0_165, %c19_166] : memref<8x256xbf16, #tpu.memory_space<vmem>>, vector<8x144xbf16>
    %c4_167 = arith.constant 4 : index
    %c0_168 = arith.constant 0 : index
    %c0_169 = arith.constant 0 : index
    %210 = vector.load %arg3[%c4_167, %c0_168, %c0_169] : memref<9x8x8xbf16, #tpu.memory_space<vmem>>, vector<1x8x8xbf16>
    %211 = vector.shape_cast %210 : vector<1x8x8xbf16> to vector<8x8xbf16>
    %cst_170 = arith.constant dense<0.000000e+00> : vector<8x144xf32>
    %212 = tpu.matmul %211, %209, %cst_170 {dimension_numbers = #tpu.dot_dimension_numbers<[1], [0], [0], [1], [0, 0, 1, 1], [], []>} : vector<8x8xbf16>, vector<8x144xbf16>, vector<8x144xf32> -> vector<8x144xf32>
    %213 = arith.addf %208, %212 : vector<8x144xf32>
    %c0_171 = arith.constant 0 : index
    %c20 = arith.constant 20 : index
    %214 = vector.load %arg7[%c0_171, %c20] : memref<8x256xbf16, #tpu.memory_space<vmem>>, vector<8x144xbf16>
    %c5 = arith.constant 5 : index
    %c0_172 = arith.constant 0 : index
    %c0_173 = arith.constant 0 : index
    %215 = vector.load %arg3[%c5, %c0_172, %c0_173] : memref<9x8x8xbf16, #tpu.memory_space<vmem>>, vector<1x8x8xbf16>
    %216 = vector.shape_cast %215 : vector<1x8x8xbf16> to vector<8x8xbf16>
    %cst_174 = arith.constant dense<0.000000e+00> : vector<8x144xf32>
    %217 = tpu.matmul %216, %214, %cst_174 {dimension_numbers = #tpu.dot_dimension_numbers<[1], [0], [0], [1], [0, 0, 1, 1], [], []>} : vector<8x8xbf16>, vector<8x144xbf16>, vector<8x144xf32> -> vector<8x144xf32>
    %218 = arith.addf %213, %217 : vector<8x144xf32>
    %c0_175 = arith.constant 0 : index
    %c36_176 = arith.constant 36 : index
    %219 = vector.load %arg7[%c0_175, %c36_176] : memref<8x256xbf16, #tpu.memory_space<vmem>>, vector<8x144xbf16>
    %c6 = arith.constant 6 : index
    %c0_177 = arith.constant 0 : index
    %c0_178 = arith.constant 0 : index
    %220 = vector.load %arg3[%c6, %c0_177, %c0_178] : memref<9x8x8xbf16, #tpu.memory_space<vmem>>, vector<1x8x8xbf16>
    %221 = vector.shape_cast %220 : vector<1x8x8xbf16> to vector<8x8xbf16>
    %cst_179 = arith.constant dense<0.000000e+00> : vector<8x144xf32>
    %222 = tpu.matmul %221, %219, %cst_179 {dimension_numbers = #tpu.dot_dimension_numbers<[1], [0], [0], [1], [0, 0, 1, 1], [], []>} : vector<8x8xbf16>, vector<8x144xbf16>, vector<8x144xf32> -> vector<8x144xf32>
    %223 = arith.addf %218, %222 : vector<8x144xf32>
    %c0_180 = arith.constant 0 : index
    %c37_181 = arith.constant 37 : index
    %224 = vector.load %arg7[%c0_180, %c37_181] : memref<8x256xbf16, #tpu.memory_space<vmem>>, vector<8x144xbf16>
    %c7 = arith.constant 7 : index
    %c0_182 = arith.constant 0 : index
    %c0_183 = arith.constant 0 : index
    %225 = vector.load %arg3[%c7, %c0_182, %c0_183] : memref<9x8x8xbf16, #tpu.memory_space<vmem>>, vector<1x8x8xbf16>
    %226 = vector.shape_cast %225 : vector<1x8x8xbf16> to vector<8x8xbf16>
    %cst_184 = arith.constant dense<0.000000e+00> : vector<8x144xf32>
    %227 = tpu.matmul %226, %224, %cst_184 {dimension_numbers = #tpu.dot_dimension_numbers<[1], [0], [0], [1], [0, 0, 1, 1], [], []>} : vector<8x8xbf16>, vector<8x144xbf16>, vector<8x144xf32> -> vector<8x144xf32>
    %228 = arith.addf %223, %227 : vector<8x144xf32>
    %c0_185 = arith.constant 0 : index
    %c38 = arith.constant 38 : index
    %229 = vector.load %arg7[%c0_185, %c38] : memref<8x256xbf16, #tpu.memory_space<vmem>>, vector<8x144xbf16>
    %c8 = arith.constant 8 : index
    %c0_186 = arith.constant 0 : index
    %c0_187 = arith.constant 0 : index
    %230 = vector.load %arg3[%c8, %c0_186, %c0_187] : memref<9x8x8xbf16, #tpu.memory_space<vmem>>, vector<1x8x8xbf16>
    %231 = vector.shape_cast %230 : vector<1x8x8xbf16> to vector<8x8xbf16>
    %cst_188 = arith.constant dense<0.000000e+00> : vector<8x144xf32>
    %232 = tpu.matmul %231, %229, %cst_188 {dimension_numbers = #tpu.dot_dimension_numbers<[1], [0], [0], [1], [0, 0, 1, 1], [], []>} : vector<8x8xbf16>, vector<8x144xbf16>, vector<8x144xf32> -> vector<8x144xf32>
    %233 = arith.addf %228, %232 : vector<8x144xf32>
    %c0_189 = arith.constant 0 : index
    %c0_190 = arith.constant 0 : index
    %234 = vector.load %arg4[%c0_189, %c0_190] : memref<8x1xf32, #tpu.memory_space<vmem>>, vector<8x1xf32>
    %235 = vector.broadcast %234 : vector<8x1xf32> to vector<8x144xf32>
    %236 = arith.mulf %233, %235 : vector<8x144xf32>
    %c0_191 = arith.constant 0 : index
    %c0_192 = arith.constant 0 : index
    %237 = vector.load %arg5[%c0_191, %c0_192] : memref<8x1xf32, #tpu.memory_space<vmem>>, vector<8x1xf32>
    %238 = vector.broadcast %237 : vector<8x1xf32> to vector<8x144xf32>
    %239 = arith.addf %236, %238 : vector<8x144xf32>
    %cst_193 = arith.constant 0.000000e+00 : f32
    %240 = vector.broadcast %cst_193 : f32 to vector<8x144xf32>
    %241 = arith.maximumf %239, %240 : vector<8x144xf32>
    %242 = vector.extract_strided_slice %241 {offsets = [0, 0], sizes = [8, 16], strides = [1, 1]} : vector<8x144xf32> to vector<8x16xf32>
    %243 = vector.extract_strided_slice %241 {offsets = [0, 18], sizes = [8, 16], strides = [1, 1]} : vector<8x144xf32> to vector<8x16xf32>
    %244 = vector.extract_strided_slice %241 {offsets = [0, 36], sizes = [8, 16], strides = [1, 1]} : vector<8x144xf32> to vector<8x16xf32>
    %245 = vector.extract_strided_slice %241 {offsets = [0, 54], sizes = [8, 16], strides = [1, 1]} : vector<8x144xf32> to vector<8x16xf32>
    %246 = vector.extract_strided_slice %241 {offsets = [0, 72], sizes = [8, 16], strides = [1, 1]} : vector<8x144xf32> to vector<8x16xf32>
    %247 = vector.extract_strided_slice %241 {offsets = [0, 90], sizes = [8, 16], strides = [1, 1]} : vector<8x144xf32> to vector<8x16xf32>
    %248 = vector.extract_strided_slice %241 {offsets = [0, 108], sizes = [8, 16], strides = [1, 1]} : vector<8x144xf32> to vector<8x16xf32>
    %249 = vector.extract_strided_slice %241 {offsets = [0, 126], sizes = [8, 16], strides = [1, 1]} : vector<8x144xf32> to vector<8x16xf32>
    %250 = tpu.concatenate %242, %243, %244, %245, %246, %247, %248, %249 in 1 : vector<8x16xf32>, vector<8x16xf32>, vector<8x16xf32>, vector<8x16xf32>, vector<8x16xf32>, vector<8x16xf32>, vector<8x16xf32>, vector<8x16xf32> -> vector<8x128xf32>
    %c0_194 = arith.constant 0 : index
    %c0_195 = arith.constant 0 : index
    %c0_196 = arith.constant 0 : index
    %251 = vector.load %arg6[%c0_194, %c0_195, %c0_196] : memref<1x8x128xf32, #tpu.memory_space<vmem>>, vector<1x8x128xf32>
    %252 = vector.shape_cast %251 : vector<1x8x128xf32> to vector<8x128xf32>
    %253 = vector.shape_cast %250 : vector<8x128xf32> to vector<1x8x128xf32>
    tpu.vector_store %arg6[%c0_194, %c0_195, %c0_196], %253 {strides = array<i32>} : memref<1x8x128xf32, #tpu.memory_space<vmem>>, vector<1x8x128xf32>,
    return
  }
  func.func @transform_0(%arg0: i32, %arg1: i32) -> (i32, i32, i32, i32) {
    %c0_i32 = arith.constant 0 : i32
    %c0_i32_0 = arith.constant 0 : i32
    %c0_i32_1 = arith.constant 0 : i32
    %c0_i32_2 = arith.constant 0 : i32
    return %arg0, %c0_i32, %c0_i32_0, %c0_i32_1 : i32, i32, i32, i32
  }
  func.func @transform_1(%arg0: i32, %arg1: i32) -> (i32, i32, i32) {
    %c0_i32 = arith.constant 0 : i32
    %c0_i32_0 = arith.constant 0 : i32
    %c0_i32_1 = arith.constant 0 : i32
    %c0_i32_2 = arith.constant 0 : i32
    return %c0_i32, %c0_i32_0, %c0_i32_1 : i32, i32, i32
  }
  func.func @transform_2(%arg0: i32, %arg1: i32) -> (i32, i32) {
    %c0_i32 = arith.constant 0 : i32
    %c0_i32_0 = arith.constant 0 : i32
    %c0_i32_1 = arith.constant 0 : i32
    return %c0_i32, %c0_i32_0 : i32, i32
  }
  func.func @transform_3(%arg0: i32, %arg1: i32) -> (i32, i32) {
    %c0_i32 = arith.constant 0 : i32
    %c0_i32_0 = arith.constant 0 : i32
    %c0_i32_1 = arith.constant 0 : i32
    return %c0_i32, %c0_i32_0 : i32, i32
  }
  func.func @transform_4(%arg0: i32, %arg1: i32) -> (i32, i32, i32) {
    %c0_i32 = arith.constant 0 : i32
    %c0_i32_0 = arith.constant 0 : i32
    return %arg0, %c0_i32, %arg1 : i32, i32, i32
  }
}

</mosaic_0001>

<llo_original>
// kernel: tpu_custom_call.1
$region0: #{tpu_custom_call.1}
  #allocation0 [shape = 'u32[]', space=smem, size = 0x4, offset = 0x4, fixed_abs, tag = 'smem constant byte address 0x4 - core index']
  #allocation1 [shape = 'u32[144,128]{1,0:T(1,128)}', space=vmem, size = 0x12000, scoped, tag = 'internal scratch']
  #allocation2 [shape = 'bf16[8,256]{1,0:T(8,128)(2,1)}', space=vmem, size = 0x1000, scoped, tag = 'scratch operand']
  %s0 = inlined_call_operand.hbm [shape: f32[2,4,16,16], index: 0, kind: input, shape index: {}]
  %s1 = inlined_call_operand.vmem [shape: bf16[9,8,8], index: 1, kind: input, shape index: {}]
  %s2 = inlined_call_operand.vmem [shape: f32[8,1], index: 2, kind: input, shape index: {}]
  %s3 = inlined_call_operand.vmem [shape: f32[8,1], index: 3, kind: input, shape index: {}]
  %s4 = inlined_call_operand.hbm [shape: f32[2,8,256], index: 4, kind: output, shape index: {}]
  %s5 = sld [smem:[#allocation0]]
  $region53: #{tpu_custom_call.1} parent=0
    _
  %s7 = ssub.s32 1, %s5
  %s8 = scalar_select 0, %s7, %s5
  $region1: #{tpu_custom_call.1} parent=0
    #allocation3 [shape = 'u8[65536]{0}', space=vmem, size = 0x10000, scoped, tag = 'input window, operand 0']
    #allocation4 [shape = 's32[2]{0}', space=sflag, size = 0x8, scoped, tag = 'scoped memory for tpu_custom_call.1']
    #allocation5 [shape = 's32[2]{0}', space=sflag, size = 0x8, scoped, tag = 'scoped memory for tpu_custom_call.1']
    #allocation6 [shape = 'u8[8192]{0}', space=vmem, size = 0x2000, scoped, tag = 'output window, operand 0']
    %9 = vsyncpa [#allocation4], 0
    %s10 = scalar_lea.sflag [#allocation4], 1
    %11 = vsyncpa %s10, 0
    %12 = vsyncpa [#allocation5], 0
    %s13 = scalar_lea.sflag [#allocation5], 1
    %14 = vsyncpa %s13, 0
    loop: start=0, step=1, limit=6
    $region2: #{tpu_custom_call.1} parent=1 // loop_pre_header
      _
    $region3: #{tpu_custom_call.1} parent=1 // loop_header
      %s16 = sphi 0, %s20
      %p17 = scmp.ge.s32.totalorder %s16, 6
      %s23 = sphi 0, %s35
      %s24 = sphi 0, %s31
      %s25 = sphi 0, %s23
      %s26 = sphi 0, %s24
      %s27 = sphi 0, %s25
      %s28 = sphi 0, %s26
      %s38 = sphi 0, %s40
      %s41 = sphi 0, %s38
      %s42 = sphi 0, %s41
      %s58 = sphi 0, %s42
      %s62 = sphi 0, %s62
      %s64 = sphi 0, %s62
      %s65 = sphi 0, %s64
      %s79 = sphi 0, %s65
      %s83 = sphi 0, %s83
      %s85 = sphi 0, %s83
      %s86 = sphi 0, %s85
      %s100 = sphi 0, %s86
      %s104 = sphi 0, %s104
      %s106 = sphi 0, %s104
      %s107 = sphi 0, %s106
      %s121 = sphi 0, %s107
      %s129 = sphi 0, %s131
      %s132 = sphi 0, %s129
      %s133 = sphi 0, %s132
      %s149 = sphi 0, %s133
    $region4: #{tpu_custom_call.1} parent=1 // loop_header_branch
      %19 = sbr.rel (%p17) target = $region8
    $region5: #{tpu_custom_call.1} parent=1 // loop_body
      %s21 = ssub.s32 %s16, 1
      %s22 = ssub.s32 %s16, 2
      %s29 = sadd.s32 1, %s24
      %p30 = scmp.ge.s32.totalorder %s29, 2
      %s31 = scalar_select %p30, 0, %s29
      %s32 = sadd.s32 1, %s23
      %s33 = scalar_select %p30, %s32, %s23
      %p34 = scmp.ge.s32.totalorder %s33, 2
      %s35 = scalar_select %p34, 0, %s33
      %s36 = ssub.s32 %s23, %s35
      %p37 = scmp.eq.s32.totalorder %s36, 0
      %s39 = sadd.s32 %s38, 1
      %s40 = scalar_select %p37, %s38, %s39
      %p43 = pneg %p37
      %p44 = scmp.eq.s32.totalorder %s16, 3
      %p45 = por %p43, %p44
      %p46 = scmp.ne.s32.totalorder %s38, %s41
      %p47 = scmp.eq.s32.totalorder %s16, 0
      %p48 = por %p46, %p47
      %p49 = scmp.ne.s32.totalorder %s38, %s41
      %p50 = scmp.eq.s32.totalorder %s21, 3
      %p51 = por %p49, %p50
      %p52 = scmp.ne.s32.totalorder %s41, %s42
      %p53 = scmp.eq.s32.totalorder %s21, 0
      %p54 = por %p52, %p53
      %p55 = scmp.ne.s32.totalorder %s41, %s42
      %p56 = scmp.eq.s32.totalorder %s22, 3
      %p57 = por %p55, %p56
      %p59 = scmp.ne.s32.totalorder %s42, %s58
      %p60 = scmp.eq.s32.totalorder %s22, 0
      %p61 = por %p59, %p60
      %s63 = sadd.s32 %s62, 1
      %p66 = scmp.eq.s32.totalorder %s16, 3
      %p67 = scmp.ne.s32.totalorder %s62, %s64
      %p68 = scmp.eq.s32.totalorder %s16, 0
      %p69 = por %p67, %p68
      %p70 = scmp.ne.s32.totalorder %s62, %s64
      %p71 = scmp.eq.s32.totalorder %s21, 3
      %p72 = por %p70, %p71
      %p73 = scmp.ne.s32.totalorder %s64, %s65
      %p74 = scmp.eq.s32.totalorder %s21, 0
      %p75 = por %p73, %p74
      %p76 = scmp.ne.s32.totalorder %s64, %s65
      %p77 = scmp.eq.s32.totalorder %s22, 3
      %p78 = por %p76, %p77
      %p80 = scmp.ne.s32.totalorder %s65, %s79
      %p81 = scmp.eq.s32.totalorder %s22, 0
      %p82 = por %p80, %p81
      %s84 = sadd.s32 %s83, 1
      %p87 = scmp.eq.s32.totalorder %s16, 3
      %p88 = scmp.ne.s32.totalorder %s83, %s85
      %p89 = scmp.eq.s32.totalorder %s16, 0
      %p90 = por %p88, %p89
      %p91 = scmp.ne.s32.totalorder %s83, %s85
      %p92 = scmp.eq.s32.totalorder %s21, 3
      %p93 = por %p91, %p92
      %p94 = scmp.ne.s32.totalorder %s85, %s86
      %p95 = scmp.eq.s32.totalorder %s21, 0
      %p96 = por %p94, %p95
      %p97 = scmp.ne.s32.totalorder %s85, %s86
      %p98 = scmp.eq.s32.totalorder %s22, 3
      %p99 = por %p97, %p98
      %p101 = scmp.ne.s32.totalorder %s86, %s100
      %p102 = scmp.eq.s32.totalorder %s22, 0
      %p103 = por %p101, %p102
      %s105 = sadd.s32 %s104, 1
      %p108 = scmp.eq.s32.totalorder %s16, 3
      %p109 = scmp.ne.s32.totalorder %s104, %s106
      %p110 = scmp.eq.s32.totalorder %s16, 0
      %p111 = por %p109, %p110
      %p112 = scmp.ne.s32.totalorder %s104, %s106
      %p113 = scmp.eq.s32.totalorder %s21, 3
      %p114 = por %p112, %p113
      %p115 = scmp.ne.s32.totalorder %s106, %s107
      %p116 = scmp.eq.s32.totalorder %s21, 0
      %p117 = por %p115, %p116
      %p118 = scmp.ne.s32.totalorder %s106, %s107
      %p119 = scmp.eq.s32.totalorder %s22, 3
      %p120 = por %p118, %p119
      %p122 = scmp.ne.s32.totalorder %s107, %s121
      %p123 = scmp.eq.s32.totalorder %s22, 0
      %p124 = por %p122, %p123
      %s125 = ssub.s32 %s23, %s35
      %s126 = ssub.s32 %s24, %s31
      %s127 = sor.u32 %s125, %s126
      %p128 = scmp.eq.s32.totalorder %s127, 0
      %s130 = sadd.s32 %s129, 1
      %s131 = scalar_select %p128, %s129, %s130
      %p134 = pneg %p128
      %p135 = scmp.eq.s32.totalorder %s16, 3
      %p136 = por %p134, %p135
      %p137 = scmp.ne.s32.totalorder %s129, %s132
      %p138 = scmp.eq.s32.totalorder %s16, 0
      %p139 = por %p137, %p138
      %p140 = scmp.ne.s32.totalorder %s129, %s132
      %p141 = scmp.eq.s32.totalorder %s21, 3
      %p142 = por %p140, %p141
      %p143 = scmp.ne.s32.totalorder %s132, %s133
      %p144 = scmp.eq.s32.totalorder %s21, 0
      %p145 = por %p143, %p144
      %p146 = scmp.ne.s32.totalorder %s132, %s133
      %p147 = scmp.eq.s32.totalorder %s22, 3
      %p148 = por %p146, %p147
      %p150 = scmp.ne.s32.totalorder %s133, %s149
      %p151 = scmp.eq.s32.totalorder %s22, 0
      %p152 = por %p150, %p151
      %p153 = scmp.le.s32.totalorder 1, %s16
      %p154 = scmp.lt.s32.totalorder %s16, 5
      %p155 = pnand %p153, %p154
      %p156 = pneg %p155
      // Predicated region
      $region9: #{tpu_custom_call.1} parent=5 // pred_check
        _
      $region10: #{tpu_custom_call.1} parent=5 // pred_check_branch
        %158 = sbr.rel (%p155) target = $region12
      $region11: #{tpu_custom_call.1} parent=5 // pred_region
        %s159 = ssub.s32 %s16, 1
        // Predicated region
        $region13: #{tpu_custom_call.1} parent=11 // pred_check
          %p160 = pneg %p75
        $region14: #{tpu_custom_call.1} parent=11 // pred_check_branch
          %162 = sbr.rel (%p160) target = $region16
        $region15: #{tpu_custom_call.1} parent=11 // pred_region
          _
        $region16: #{tpu_custom_call.1} parent=11 // pred_fallthru
          _
        // Predicated region
        $region17: #{tpu_custom_call.1} parent=11 // pred_check
          %p163 = pneg %p96
        $region18: #{tpu_custom_call.1} parent=11 // pred_check_branch
          %165 = sbr.rel (%p163) target = $region20
        $region19: #{tpu_custom_call.1} parent=11 // pred_region
          _
        $region20: #{tpu_custom_call.1} parent=11 // pred_fallthru
          _
        // Predicated region
        $region21: #{tpu_custom_call.1} parent=11 // pred_check
          %p166 = pneg %p117
        $region22: #{tpu_custom_call.1} parent=11 // pred_check_branch
          %168 = sbr.rel (%p166) target = $region24
        $region23: #{tpu_custom_call.1} parent=11 // pred_region
          _
        $region24: #{tpu_custom_call.1} parent=11 // pred_fallthru
          _
      $region12: #{tpu_custom_call.1} parent=5 // pred_fallthru
        _
      %p169 = scmp.lt.s32.totalorder %s16, 4
      // Predicated region
      $region25: #{tpu_custom_call.1} parent=5 // pred_check
        %p170 = pneg %p169
      $region26: #{tpu_custom_call.1} parent=5 // pred_check_branch
        %172 = sbr.rel (%p170) target = $region28
      $region27: #{tpu_custom_call.1} parent=5 // pred_region
        // Predicated region
        $region29: #{tpu_custom_call.1} parent=27 // pred_check
          %p173 = pneg %p48
        $region30: #{tpu_custom_call.1} parent=27 // pred_check_branch
          %175 = sbr.rel (%p173) target = $region32
        $region31: #{tpu_custom_call.1} parent=27 // pred_region
          %s176 = sand.u32 %s38, 1
          %s177 = scalar_lea.sflag [#allocation4], %s176
          %s178 = sand.u32 %s38, 1
          %s179 = smul.addr %s178, 64
          %s180 = scalar_lea.vmem [#allocation3], %s179
          %s182 = ssub.s32 1024, 1024
          %183 = vsyncadd %s177, %s182
          %s184 = smul.addr %s23, 8
          %s185 = smul.addr %s184, 128
          %s186 = scalar_lea.hbm %s0, %s185
          %s187 = sshll.u32 %s180, 4
          %s188 = int_to_ptr.vmem [resolvable:$true] %s187
          %193 = dma.hbm_to_vmem [thread:$0]  %s186, 1024, %s188, %s177, 128, 128, 8
        $region32: #{tpu_custom_call.1} parent=27 // pred_fallthru
          _
      $region28: #{tpu_custom_call.1} parent=5 // pred_fallthru
        _
      %p194 = scmp.le.s32.totalorder 1, %s16
      %p195 = scmp.lt.s32.totalorder %s16, 5
      %p196 = pnand %p194, %p195
      %p197 = pneg %p196
      // Predicated region
      $region33: #{tpu_custom_call.1} parent=5 // pred_check
        _
      $region34: #{tpu_custom_call.1} parent=5 // pred_check_branch
        %199 = sbr.rel (%p196) target = $region36
      $region35: #{tpu_custom_call.1} parent=5 // pred_region
        %s200 = ssub.s32 %s16, 1
        %s201 = sand.u32 %s41, 1
        %s202 = scalar_lea.sflag [#allocation4], %s201
        %s203 = sand.u32 %s41, 1
        %s204 = smul.addr %s203, 64
        %s205 = scalar_lea.vmem [#allocation3], %s204
        // Predicated region
        $region37: #{tpu_custom_call.1} parent=35 // pred_check
          %p206 = pneg %p54
        $region38: #{tpu_custom_call.1} parent=35 // pred_check_branch
          %208 = sbr.rel (%p206) target = $region40
        $region39: #{tpu_custom_call.1} parent=35 // pred_region
          %209 = dma.done %s202, 1024
        $region40: #{tpu_custom_call.1} parent=35 // pred_fallthru
          _
        %s210 = sand.u32 %s41, 1
        %s211 = scalar_lea.sflag [#allocation4], %s210
        %s212 = sand.u32 %s41, 1
        %s213 = smul.addr %s212, 64
        %s214 = scalar_lea.vmem [#allocation3], %s213
        %p215 = pneg %p54
        %p216 = pneg %p51
        %p217 = pneg %p75
        %p218 = pneg %p72
        %p219 = pneg %p96
        %p220 = pneg %p93
        %p221 = pneg %p117
        %p222 = pneg %p114
        %p223 = pneg %p145
        %p224 = pneg %p142
        %s225 = sand.u32 %s132, 1
        %s226 = scalar_lea.sflag [#allocation5], %s225
        %s227 = sand.u32 %s132, 1
        %s228 = smul.addr %s227, 8
        %s229 = scalar_lea.vmem [#allocation6], %s228
        %s231 = smul.u32 %s26, 8
        %232 = vst [vmem:[#allocation2] sm:$0xcc] 0
        %s233 = sadd.s32 %s231, 4294967295
        %p234 = scmp.ge.s32.totalorder %s233, 0
        %p235 = scmp.lt.s32.totalorder %s233, 16
        %p236 = pnand %p234, %p235
        %p237 = pneg %p236
        %p238 = scmp.gt.s32.totalorder %s233, 0
        %s239 = scalar_select %p238, %s233, 0
        %p240 = scmp.lt.s32.totalorder %s239, 15
        %s241 = scalar_select %p240, %s239, 15
        %s242 = scalar_lea.vmem %s205, %s241 [#allocation3]
        %v243 = vld [vmem:[%s242] sm:$0x1]
        %v244 = vld [vmem:[%s242 + $0x10] sm:$0x1]
        %v245 = vld [vmem:[%s242 + $0x20] sm:$0x1]
        %v246 = vld [vmem:[%s242 + $0x30] sm:$0x1]
        %s247 = scalar_select %p237, 1, 0
        %v248 = vstv %s247
        %vm249 = vcmp.eq.s32.totalorder %v248, 1
        %v250 = vsel %vm249, %v243, 0.0
        %v251 = vsel %vm249, %v244, 0.0
        %v252 = vsel %vm249, %v245, 0.0
        %v253 = vsel %vm249, %v246, 0.0
        %v254 = vpack.c.bf16 %v250, %v250
        %v255 = vpack.c.bf16 %v251, %v251
        %v256 = vpack.c.bf16 %v252, %v252
        %v257 = vpack.c.bf16 %v253, %v253
        %vm258 = vcmask 1024
        %259 = vst.msk [vmem:[#allocation2] sm:$0x3] %vm258, 0
        %vm260 = vcmask 140424
        %261 = vst.msk [vmem:[#allocation2] sm:$0x3] %vm260, 0
        %v266 = vunpack.c.l.b16 %v254
        %v267 = vunpack.c.l.b16 %v255
        %v268 = vunpack.c.l.b16 %v256
        %v269 = vunpack.c.l.b16 %v257
        %v270 = vpack.c.b16 %v266, %v266
        %v271 = vpack.c.b16 %v267, %v267
        %v272 = vpack.c.b16 %v268, %v268
        %v273 = vpack.c.b16 %v269, %v269
        %v274 = vunpack.c.l.b16 %v270
        %v275 = vunpack.c.l.b16 %v271
        %v276 = vunpack.c.l.b16 %v272
        %v277 = vunpack.c.l.b16 %v273
        %v278 = vrot.slane %v275, 7
        %vm279 = vcmask 1041409
        %v280 = vsel %vm279, %v278, %v274
        %v281 = vrot.slane %v276, 6
        %vm282 = vcmask 1042434
        %v283 = vsel %vm282, %v281, %v280
        %v284 = vrot.slane %v277, 5
        %vm285 = vcmask 1043459
        %v286 = vsel %vm285, %v284, %v283
        %v287 = vpack.c.b16 %v286, %v286
        %288 = vrot.lane.b32.xlu0 %v287, 1
        %v289 = vpop.permute.xlu0 %288
        %vm291 = vcmask 132104
        %292 = vst.msk [vmem:[#allocation2] sm:$0x3] %vm291, %v289
        %p293 = scmp.ge.s32.totalorder %s231, 0
        %p294 = scmp.lt.s32.totalorder %s231, 16
        %p295 = pnand %p293, %p294
        %p296 = pneg %p295
        %p297 = scmp.gt.s32.totalorder %s231, 0
        %s298 = scalar_select %p297, %s231, 0
        %p299 = scmp.lt.s32.totalorder %s298, 15
        %s300 = scalar_select %p299, %s298, 15
        %s301 = scalar_lea.vmem %s205, %s300 [#allocation3]
        %v302 = vld [vmem:[%s301] sm:$0x1]
        %v303 = vld [vmem:[%s301 + $0x10] sm:$0x1]
        %v304 = vld [vmem:[%s301 + $0x20] sm:$0x1]
        %v305 = vld [vmem:[%s301 + $0x30] sm:$0x1]
        %s306 = scalar_select %p296, 1, 0
        %v307 = vstv %s306
        %vm308 = vcmp.eq.s32.totalorder %v307, 1
        %v309 = vsel %vm308, %v302, 0.0
        %v310 = vsel %vm308, %v303, 0.0
        %v311 = vsel %vm308, %v304, 0.0
        %v312 = vsel %vm308, %v305, 0.0
        %v313 = vpack.c.bf16 %v309, %v309
        %v314 = vpack.c.bf16 %v310, %v310
        %v315 = vpack.c.bf16 %v311, %v311
        %v316 = vpack.c.bf16 %v312, %v312
        %vm317 = vcmask 148624
        %318 = vst.msk [vmem:[#allocation2] sm:$0x3] %vm317, 0
        %vm319 = vcmask 288024
        %320 = vst.msk [vmem:[#allocation2] sm:$0x3] %vm319, 0
        %v325 = vunpack.c.l.b16 %v313
        %v326 = vunpack.c.l.b16 %v314
        %v327 = vunpack.c.l.b16 %v315
        %v328 = vunpack.c.l.b16 %v316
        %v329 = vpack.c.b16 %v325, %v325
        %v330 = vpack.c.b16 %v326, %v326
        %v331 = vpack.c.b16 %v327, %v327
        %v332 = vpack.c.b16 %v328, %v328
        %v333 = vunpack.c.l.b16 %v329
        %v334 = vunpack.c.l.b16 %v330
        %v335 = vunpack.c.l.b16 %v331
        %v336 = vunpack.c.l.b16 %v332
        %v337 = vrot.slane %v334, 7
        %v338 = vsel %vm279, %v337, %v333
        %v339 = vrot.slane %v335, 6
        %v340 = vsel %vm282, %v339, %v338
        %v341 = vrot.slane %v336, 5
        %v342 = vsel %vm285, %v341, %v340
        %v343 = vpack.c.b16 %v342, %v342
        %344 = vrot.lane.b32.xlu0 %v343, 19
        %v345 = vpop.permute.xlu0 %344
        %vm347 = vcmask 279704
        %348 = vst.msk [vmem:[#allocation2] sm:$0x3] %vm347, %v345
        %s349 = sadd.s32 %s231, 1
        %p350 = scmp.ge.s32.totalorder %s349, 0
        %p351 = scmp.lt.s32.totalorder %s349, 16
        %p352 = pnand %p350, %p351
        %p353 = pneg %p352
        %p354 = scmp.gt.s32.totalorder %s349, 0
        %s355 = scalar_select %p354, %s349, 0
        %p356 = scmp.lt.s32.totalorder %s355, 15
        %s357 = scalar_select %p356, %s355, 15
        %s358 = scalar_lea.vmem %s205, %s357 [#allocation3]
        %v359 = vld [vmem:[%s358] sm:$0x1]
        %v360 = vld [vmem:[%s358 + $0x10] sm:$0x1]
        %v361 = vld [vmem:[%s358 + $0x20] sm:$0x1]
        %v362 = vld [vmem:[%s358 + $0x30] sm:$0x1]
        %s363 = scalar_select %p353, 1, 0
        %v364 = vstv %s363
        %vm365 = vcmp.eq.s32.totalorder %v364, 1
        %v366 = vsel %vm365, %v359, 0.0
        %v367 = vsel %vm365, %v360, 0.0
        %v368 = vsel %vm365, %v361, 0.0
        %v369 = vsel %vm365, %v362, 0.0
        %v370 = vpack.c.bf16 %v366, %v366
        %v371 = vpack.c.bf16 %v367, %v367
        %v372 = vpack.c.bf16 %v368, %v368
        %v373 = vpack.c.bf16 %v369, %v369
        %vm374 = vcmask 296224
        %375 = vst.msk [vmem:[#allocation2] sm:$0x3] %vm374, 0
        %vm376 = vcmask 435624
        %377 = vst.msk [vmem:[#allocation2] sm:$0x3] %vm376, 0
        %v382 = vunpack.c.l.b16 %v370
        %v383 = vunpack.c.l.b16 %v371
        %v384 = vunpack.c.l.b16 %v372
        %v385 = vunpack.c.l.b16 %v373
        %v386 = vpack.c.b16 %v382, %v382
        %v387 = vpack.c.b16 %v383, %v383
        %v388 = vpack.c.b16 %v384, %v384
        %v389 = vpack.c.b16 %v385, %v385
        %v390 = vunpack.c.l.b16 %v386
        %v391 = vunpack.c.l.b16 %v387
        %v392 = vunpack.c.l.b16 %v388
        %v393 = vunpack.c.l.b16 %v389
        %v394 = vrot.slane %v391, 7
        %v395 = vsel %vm279, %v394, %v390
        %v396 = vrot.slane %v392, 6
        %v397 = vsel %vm282, %v396, %v395
        %v398 = vrot.slane %v393, 5
        %v399 = vsel %vm285, %v398, %v397
        %v400 = vpack.c.b16 %v399, %v399
        %401 = vrot.lane.b32.xlu0 %v400, 37
        %v402 = vpop.permute.xlu0 %401
        %vm404 = vcmask 427304
        %405 = vst.msk [vmem:[#allocation2] sm:$0x3] %vm404, %v402
        %s406 = sadd.s32 %s231, 2
        %p407 = scmp.ge.s32.totalorder %s406, 0
        %p408 = scmp.lt.s32.totalorder %s406, 16
        %p409 = pnand %p407, %p408
        %p410 = pneg %p409
        %p411 = scmp.gt.s32.totalorder %s406, 0
        %s412 = scalar_select %p411, %s406, 0
        %p413 = scmp.lt.s32.totalorder %s412, 15
        %s414 = scalar_select %p413, %s412, 15
        %s415 = scalar_lea.vmem %s205, %s414 [#allocation3]
        %v416 = vld [vmem:[%s415] sm:$0x1]
        %v417 = vld [vmem:[%s415 + $0x10] sm:$0x1]
        %v418 = vld [vmem:[%s415 + $0x20] sm:$0x1]
        %v419 = vld [vmem:[%s415 + $0x30] sm:$0x1]
        %s420 = scalar_select %p410, 1, 0
        %v421 = vstv %s420
        %vm422 = vcmp.eq.s32.totalorder %v421, 1
        %v423 = vsel %vm422, %v416, 0.0
        %v424 = vsel %vm422, %v417, 0.0
        %v425 = vsel %vm422, %v418, 0.0
        %v426 = vsel %vm422, %v419, 0.0
        %v427 = vpack.c.bf16 %v423, %v423
        %v428 = vpack.c.bf16 %v424, %v424
        %v429 = vpack.c.bf16 %v425, %v425
        %v430 = vpack.c.bf16 %v426, %v426
        %vm431 = vcmask 443824
        %432 = vst.msk [vmem:[#allocation2] sm:$0x3] %vm431, 0
        %vm433 = vcmask 583224
        %434 = vst.msk [vmem:[#allocation2] sm:$0x3] %vm433, 0
        %v439 = vunpack.c.l.b16 %v427
        %v440 = vunpack.c.l.b16 %v428
        %v441 = vunpack.c.l.b16 %v429
        %v442 = vunpack.c.l.b16 %v430
        %v443 = vpack.c.b16 %v439, %v439
        %v444 = vpack.c.b16 %v440, %v440
        %v445 = vpack.c.b16 %v441, %v441
        %v446 = vpack.c.b16 %v442, %v442
        %v447 = vunpack.c.l.b16 %v443
        %v448 = vunpack.c.l.b16 %v444
        %v449 = vunpack.c.l.b16 %v445
        %v450 = vunpack.c.l.b16 %v446
        %v451 = vrot.slane %v448, 7
        %v452 = vsel %vm279, %v451, %v447
        %v453 = vrot.slane %v449, 6
        %v454 = vsel %vm282, %v453, %v452
        %v455 = vrot.slane %v450, 5
        %v456 = vsel %vm285, %v455, %v454
        %v457 = vpack.c.b16 %v456, %v456
        %458 = vrot.lane.b32.xlu0 %v457, 55
        %v459 = vpop.permute.xlu0 %458
        %vm461 = vcmask 574904
        %462 = vst.msk [vmem:[#allocation2] sm:$0x3] %vm461, %v459
        %s463 = sadd.s32 %s231, 3
        %p464 = scmp.ge.s32.totalorder %s463, 0
        %p465 = scmp.lt.s32.totalorder %s463, 16
        %p466 = pnand %p464, %p465
        %p467 = pneg %p466
        %p468 = scmp.gt.s32.totalorder %s463, 0
        %s469 = scalar_select %p468, %s463, 0
        %p470 = scmp.lt.s32.totalorder %s469, 15
        %s471 = scalar_select %p470, %s469, 15
        %s472 = scalar_lea.vmem %s205, %s471 [#allocation3]
        %v473 = vld [vmem:[%s472] sm:$0x1]
        %v474 = vld [vmem:[%s472 + $0x10] sm:$0x1]
        %v475 = vld [vmem:[%s472 + $0x20] sm:$0x1]
        %v476 = vld [vmem:[%s472 + $0x30] sm:$0x1]
        %s477 = scalar_select %p467, 1, 0
        %v478 = vstv %s477
        %vm479 = vcmp.eq.s32.totalorder %v478, 1
        %v480 = vsel %vm479, %v473, 0.0
        %v481 = vsel %vm479, %v474, 0.0
        %v482 = vsel %vm479, %v475, 0.0
        %v483 = vsel %vm479, %v476, 0.0
        %v484 = vpack.c.bf16 %v480, %v480
        %v485 = vpack.c.bf16 %v481, %v481
        %v486 = vpack.c.bf16 %v482, %v482
        %v487 = vpack.c.bf16 %v483, %v483
        %vm488 = vcmask 591424
        %489 = vst.msk [vmem:[#allocation2] sm:$0x3] %vm488, 0
        %vm490 = vcmask 730824
        %491 = vst.msk [vmem:[#allocation2] sm:$0x3] %vm490, 0
        %v496 = vunpack.c.l.b16 %v484
        %v497 = vunpack.c.l.b16 %v485
        %v498 = vunpack.c.l.b16 %v486
        %v499 = vunpack.c.l.b16 %v487
        %v500 = vpack.c.b16 %v496, %v496
        %v501 = vpack.c.b16 %v497, %v497
        %v502 = vpack.c.b16 %v498, %v498
        %v503 = vpack.c.b16 %v499, %v499
        %v504 = vunpack.c.l.b16 %v500
        %v505 = vunpack.c.l.b16 %v501
        %v506 = vunpack.c.l.b16 %v502
        %v507 = vunpack.c.l.b16 %v503
        %v508 = vrot.slane %v505, 7
        %v509 = vsel %vm279, %v508, %v504
        %v510 = vrot.slane %v506, 6
        %v511 = vsel %vm282, %v510, %v509
        %v512 = vrot.slane %v507, 5
        %v513 = vsel %vm285, %v512, %v511
        %v514 = vpack.c.b16 %v513, %v513
        %515 = vrot.lane.b32.xlu0 %v514, 73
        %v516 = vpop.permute.xlu0 %515
        %vm518 = vcmask 722504
        %519 = vst.msk [vmem:[#allocation2] sm:$0x3] %vm518, %v516
        %s520 = sadd.s32 %s231, 4
        %p521 = scmp.ge.s32.totalorder %s520, 0
        %p522 = scmp.lt.s32.totalorder %s520, 16
        %p523 = pnand %p521, %p522
        %p524 = pneg %p523
        %p525 = scmp.gt.s32.totalorder %s520, 0
        %s526 = scalar_select %p525, %s520, 0
        %p527 = scmp.lt.s32.totalorder %s526, 15
        %s528 = scalar_select %p527, %s526, 15
        %s529 = scalar_lea.vmem %s205, %s528 [#allocation3]
        %v530 = vld [vmem:[%s529] sm:$0x1]
        %v531 = vld [vmem:[%s529 + $0x10] sm:$0x1]
        %v532 = vld [vmem:[%s529 + $0x20] sm:$0x1]
        %v533 = vld [vmem:[%s529 + $0x30] sm:$0x1]
        %s534 = scalar_select %p524, 1, 0
        %v535 = vstv %s534
        %vm536 = vcmp.eq.s32.totalorder %v535, 1
        %v537 = vsel %vm536, %v530, 0.0
        %v538 = vsel %vm536, %v531, 0.0
        %v539 = vsel %vm536, %v532, 0.0
        %v540 = vsel %vm536, %v533, 0.0
        %v541 = vpack.c.bf16 %v537, %v537
        %v542 = vpack.c.bf16 %v538, %v538
        %v543 = vpack.c.bf16 %v539, %v539
        %v544 = vpack.c.bf16 %v540, %v540
        %vm545 = vcmask 739024
        %546 = vst.msk [vmem:[#allocation2] sm:$0x3] %vm545, 0
        %vm547 = vcmask 878424
        %548 = vst.msk [vmem:[#allocation2] sm:$0x3] %vm547, 0
        %v553 = vunpack.c.l.b16 %v541
        %v554 = vunpack.c.l.b16 %v542
        %v555 = vunpack.c.l.b16 %v543
        %v556 = vunpack.c.l.b16 %v544
        %v557 = vpack.c.b16 %v553, %v553
        %v558 = vpack.c.b16 %v554, %v554
        %v559 = vpack.c.b16 %v555, %v555
        %v560 = vpack.c.b16 %v556, %v556
        %v561 = vunpack.c.l.b16 %v557
        %v562 = vunpack.c.l.b16 %v558
        %v563 = vunpack.c.l.b16 %v559
        %v564 = vunpack.c.l.b16 %v560
        %v565 = vrot.slane %v562, 7
        %v566 = vsel %vm279, %v565, %v561
        %v567 = vrot.slane %v563, 6
        %v568 = vsel %vm282, %v567, %v566
        %v569 = vrot.slane %v564, 5
        %v570 = vsel %vm285, %v569, %v568
        %v571 = vpack.c.b16 %v570, %v570
        %572 = vrot.lane.b32.xlu0 %v571, 91
        %v573 = vpop.permute.xlu0 %572
        %vm575 = vcmask 870104
        %576 = vst.msk [vmem:[#allocation2] sm:$0x3] %vm575, %v573
        %s577 = sadd.s32 %s231, 5
        %p578 = scmp.ge.s32.totalorder %s577, 0
        %p579 = scmp.lt.s32.totalorder %s577, 16
        %p580 = pnand %p578, %p579
        %p581 = pneg %p580
        %p582 = scmp.gt.s32.totalorder %s577, 0
        %s583 = scalar_select %p582, %s577, 0
        %p584 = scmp.lt.s32.totalorder %s583, 15
        %s585 = scalar_select %p584, %s583, 15
        %s586 = scalar_lea.vmem %s205, %s585 [#allocation3]
        %v587 = vld [vmem:[%s586] sm:$0x1]
        %v588 = vld [vmem:[%s586 + $0x10] sm:$0x1]
        %v589 = vld [vmem:[%s586 + $0x20] sm:$0x1]
        %v590 = vld [vmem:[%s586 + $0x30] sm:$0x1]
        %s591 = scalar_select %p581, 1, 0
        %v592 = vstv %s591
        %vm593 = vcmp.eq.s32.totalorder %v592, 1
        %v594 = vsel %vm593, %v587, 0.0
        %v595 = vsel %vm593, %v588, 0.0
        %v596 = vsel %vm593, %v589, 0.0
        %v597 = vsel %vm593, %v590, 0.0
        %v598 = vpack.c.bf16 %v594, %v594
        %v599 = vpack.c.bf16 %v595, %v595
        %v600 = vpack.c.bf16 %v596, %v596
        %v601 = vpack.c.bf16 %v597, %v597
        %vm602 = vcmask 886624
        %603 = vst.msk [vmem:[#allocation2] sm:$0x3] %vm602, 0
        %vm604 = vcmask 1026024
        %605 = vst.msk [vmem:[#allocation2] sm:$0x3] %vm604, 0
        %v610 = vunpack.c.l.b16 %v598
        %v611 = vunpack.c.l.b16 %v599
        %v612 = vunpack.c.l.b16 %v600
        %v613 = vunpack.c.l.b16 %v601
        %v614 = vpack.c.b16 %v610, %v610
        %v615 = vpack.c.b16 %v611, %v611
        %v616 = vpack.c.b16 %v612, %v612
        %v617 = vpack.c.b16 %v613, %v613
        %v618 = vunpack.c.l.b16 %v614
        %v619 = vunpack.c.l.b16 %v615
        %v620 = vunpack.c.l.b16 %v616
        %v621 = vunpack.c.l.b16 %v617
        %v622 = vrot.slane %v619, 7
        %v623 = vsel %vm279, %v622, %v618
        %v624 = vrot.slane %v620, 6
        %v625 = vsel %vm282, %v624, %v623
        %v626 = vrot.slane %v621, 5
        %v627 = vsel %vm285, %v626, %v625
        %v628 = vpack.c.b16 %v627, %v627
        %629 = vrot.lane.b32.xlu0 %v628, 109
        %v630 = vpop.permute.xlu0 %629
        %vm632 = vcmask 1017704
        %633 = vst.msk [vmem:[#allocation2] sm:$0x3] %vm632, %v630
        %s634 = sadd.s32 %s231, 6
        %p635 = scmp.ge.s32.totalorder %s634, 0
        %p636 = scmp.lt.s32.totalorder %s634, 16
        %p637 = pnand %p635, %p636
        %p638 = pneg %p637
        %p639 = scmp.gt.s32.totalorder %s634, 0
        %s640 = scalar_select %p639, %s634, 0
        %p641 = scmp.lt.s32.totalorder %s640, 15
        %s642 = scalar_select %p641, %s640, 15
        %s643 = scalar_lea.vmem %s205, %s642 [#allocation3]
        %v644 = vld [vmem:[%s643] sm:$0x1]
        %v645 = vld [vmem:[%s643 + $0x10] sm:$0x1]
        %v646 = vld [vmem:[%s643 + $0x20] sm:$0x1]
        %v647 = vld [vmem:[%s643 + $0x30] sm:$0x1]
        %s648 = scalar_select %p638, 1, 0
        %v649 = vstv %s648
        %vm650 = vcmp.eq.s32.totalorder %v649, 1
        %v651 = vsel %vm650, %v644, 0.0
        %v652 = vsel %vm650, %v645, 0.0
        %v653 = vsel %vm650, %v646, 0.0
        %v654 = vsel %vm650, %v647, 0.0
        %v655 = vpack.c.bf16 %v651, %v651
        %v656 = vpack.c.bf16 %v652, %v652
        %v657 = vpack.c.bf16 %v653, %v653
        %v658 = vpack.c.bf16 %v654, %v654
        %vm659 = vcmask 1034224
        %660 = vst.msk [vmem:[#allocation2] sm:$0x3] %vm659, 0
        %vm661 = vcmask 124024
        %662 = vst.msk [vmem:[#allocation2 + $0x4] sm:$0x3] %vm661, 0
        %v667 = vunpack.c.l.b16 %v655
        %v668 = vunpack.c.l.b16 %v656
        %v669 = vunpack.c.l.b16 %v657
        %v670 = vunpack.c.l.b16 %v658
        %v671 = vpack.c.b16 %v667, %v667
        %v672 = vpack.c.b16 %v668, %v668
        %v673 = vpack.c.b16 %v669, %v669
        %v674 = vpack.c.b16 %v670, %v670
        %v675 = vunpack.c.l.b16 %v671
        %v676 = vunpack.c.l.b16 %v672
        %v677 = vunpack.c.l.b16 %v673
        %v678 = vunpack.c.l.b16 %v674
        %v679 = vrot.slane %v676, 7
        %v680 = vsel %vm279, %v679, %v675
        %v681 = vrot.slane %v677, 6
        %v682 = vsel %vm282, %v681, %v680
        %v683 = vrot.slane %v678, 5
        %v684 = vsel %vm285, %v683, %v682
        %v685 = vpack.c.b16 %v684, %v684
        %686 = vrot.lane.b32.xlu0 %v685, 127
        %v687 = vpop.permute.xlu0 %686
        %v688 = vrot.slane %v687, 4
        %vm689 = vcmask 1039360
        %v690 = vsel %vm689, %v688, %v687
        %vm692 = vcmask 1042424
        %vm693 = vcmask 119812
        %vm694 = vmor %vm693, %vm692
        %695 = vst.msk [vmem:[#allocation2] sm:$0x33] %vm694, %v690
        %s696 = sadd.s32 %s231, 7
        %p697 = scmp.ge.s32.totalorder %s696, 0
        %p698 = scmp.lt.s32.totalorder %s696, 16
        %p699 = pnand %p697, %p698
        %p700 = pneg %p699
        %p701 = scmp.gt.s32.totalorder %s696, 0
        %s702 = scalar_select %p701, %s696, 0
        %p703 = scmp.lt.s32.totalorder %s702, 15
        %s704 = scalar_select %p703, %s702, 15
        %s705 = scalar_lea.vmem %s205, %s704 [#allocation3]
        %v706 = vld [vmem:[%s705] sm:$0x1]
        %v707 = vld [vmem:[%s705 + $0x10] sm:$0x1]
        %v708 = vld [vmem:[%s705 + $0x20] sm:$0x1]
        %v709 = vld [vmem:[%s705 + $0x30] sm:$0x1]
        %s710 = scalar_select %p700, 1, 0
        %v711 = vstv %s710
        %vm712 = vcmp.eq.s32.totalorder %v711, 1
        %v713 = vsel %vm712, %v706, 0.0
        %v714 = vsel %vm712, %v707, 0.0
        %v715 = vsel %vm712, %v708, 0.0
        %v716 = vsel %vm712, %v709, 0.0
        %v717 = vpack.c.bf16 %v713, %v713
        %v718 = vpack.c.bf16 %v714, %v714
        %v719 = vpack.c.bf16 %v715, %v715
        %v720 = vpack.c.bf16 %v716, %v716
        %vm721 = vcmask 132224
        %722 = vst.msk [vmem:[#allocation2 + $0x4] sm:$0x3] %vm721, 0
        %vm723 = vcmask 271624
        %724 = vst.msk [vmem:[#allocation2 + $0x4] sm:$0x3] %vm723, 0
        %v729 = vunpack.c.l.b16 %v717
        %v730 = vunpack.c.l.b16 %v718
        %v731 = vunpack.c.l.b16 %v719
        %v732 = vunpack.c.l.b16 %v720
        %v733 = vpack.c.b16 %v729, %v729
        %v734 = vpack.c.b16 %v730, %v730
        %v735 = vpack.c.b16 %v731, %v731
        %v736 = vpack.c.b16 %v732, %v732
        %v737 = vunpack.c.l.b16 %v733
        %v738 = vunpack.c.l.b16 %v734
        %v739 = vunpack.c.l.b16 %v735
        %v740 = vunpack.c.l.b16 %v736
        %v741 = vrot.slane %v738, 7
        %v742 = vsel %vm279, %v741, %v737
        %v743 = vrot.slane %v739, 6
        %v744 = vsel %vm282, %v743, %v742
        %v745 = vrot.slane %v740, 5
        %v746 = vsel %vm285, %v745, %v744
        %v747 = vpack.c.b16 %v746, %v746
        %748 = vrot.lane.b32.xlu0 %v747, 17
        %v749 = vpop.permute.xlu0 %748
        %vm751 = vcmask 263304
        %752 = vst.msk [vmem:[#allocation2 + $0x4] sm:$0x3] %vm751, %v749
        %s753 = sadd.s32 %s231, 8
        %p754 = scmp.ge.s32.totalorder %s753, 0
        %p755 = scmp.lt.s32.totalorder %s753, 16
        %p756 = pnand %p754, %p755
        %p757 = pneg %p756
        %p758 = scmp.gt.s32.totalorder %s753, 0
        %s759 = scalar_select %p758, %s753, 0
        %p760 = scmp.lt.s32.totalorder %s759, 15
        %s761 = scalar_select %p760, %s759, 15
        %s762 = scalar_lea.vmem %s205, %s761 [#allocation3]
        %v763 = vld [vmem:[%s762] sm:$0x1]
        %v764 = vld [vmem:[%s762 + $0x10] sm:$0x1]
        %v765 = vld [vmem:[%s762 + $0x20] sm:$0x1]
        %v766 = vld [vmem:[%s762 + $0x30] sm:$0x1]
        %s767 = scalar_select %p757, 1, 0
        %v768 = vstv %s767
        %vm769 = vcmp.eq.s32.totalorder %v768, 1
        %v770 = vsel %vm769, %v763, 0.0
        %v771 = vsel %vm769, %v764, 0.0
        %v772 = vsel %vm769, %v765, 0.0
        %v773 = vsel %vm769, %v766, 0.0
        %v774 = vpack.c.bf16 %v770, %v770
        %v775 = vpack.c.bf16 %v771, %v771
        %v776 = vpack.c.bf16 %v772, %v772
        %v777 = vpack.c.bf16 %v773, %v773
        %vm778 = vcmask 279824
        %779 = vst.msk [vmem:[#allocation2 + $0x4] sm:$0x3] %vm778, 0
        %vm780 = vcmask 419224
        %781 = vst.msk [vmem:[#allocation2 + $0x4] sm:$0x3] %vm780, 0
        %v786 = vunpack.c.l.b16 %v774
        %v787 = vunpack.c.l.b16 %v775
        %v788 = vunpack.c.l.b16 %v776
        %v789 = vunpack.c.l.b16 %v777
        %v790 = vpack.c.b16 %v786, %v786
        %v791 = vpack.c.b16 %v787, %v787
        %v792 = vpack.c.b16 %v788, %v788
        %v793 = vpack.c.b16 %v789, %v789
        %v794 = vunpack.c.l.b16 %v790
        %v795 = vunpack.c.l.b16 %v791
        %v796 = vunpack.c.l.b16 %v792
        %v797 = vunpack.c.l.b16 %v793
        %v798 = vrot.slane %v795, 7
        %v799 = vsel %vm279, %v798, %v794
        %v800 = vrot.slane %v796, 6
        %v801 = vsel %vm282, %v800, %v799
        %v802 = vrot.slane %v797, 5
        %v803 = vsel %vm285, %v802, %v801
        %v804 = vpack.c.b16 %v803, %v803
        %805 = vrot.lane.b32.xlu0 %v804, 35
        %v806 = vpop.permute.xlu0 %805
        %vm808 = vcmask 410904
        %809 = vst.msk [vmem:[#allocation2 + $0x4] sm:$0x3] %vm808, %v806
        %s810 = sadd.s32 %s231, 9
        %p811 = scmp.ge.s32.totalorder %s810, 0
        %p812 = scmp.lt.s32.totalorder %s810, 16
        %p813 = pnand %p811, %p812
        %p814 = pneg %p813
        %p815 = scmp.gt.s32.totalorder %s810, 0
        %s816 = scalar_select %p815, %s810, 0
        %p817 = scmp.lt.s32.totalorder %s816, 15
        %s818 = scalar_select %p817, %s816, 15
        %s819 = scalar_lea.vmem %s205, %s818 [#allocation3]
        %v820 = vld [vmem:[%s819] sm:$0x1]
        %v821 = vld [vmem:[%s819 + $0x10] sm:$0x1]
        %v822 = vld [vmem:[%s819 + $0x20] sm:$0x1]
        %v823 = vld [vmem:[%s819 + $0x30] sm:$0x1]
        %s824 = scalar_select %p814, 1, 0
        %v825 = vstv %s824
        %vm826 = vcmp.eq.s32.totalorder %v825, 1
        %v827 = vsel %vm826, %v820, 0.0
        %v828 = vsel %vm826, %v821, 0.0
        %v829 = vsel %vm826, %v822, 0.0
        %v830 = vsel %vm826, %v823, 0.0
        %v831 = vpack.c.bf16 %v827, %v827
        %v832 = vpack.c.bf16 %v828, %v828
        %v833 = vpack.c.bf16 %v829, %v829
        %v834 = vpack.c.bf16 %v830, %v830
        %vm835 = vcmask 427424
        %836 = vst.msk [vmem:[#allocation2 + $0x4] sm:$0x3] %vm835, 0
        %vm837 = vcmask 566824
        %838 = vst.msk [vmem:[#allocation2 + $0x4] sm:$0x3] %vm837, 0
        %v843 = vunpack.c.l.b16 %v831
        %v844 = vunpack.c.l.b16 %v832
        %v845 = vunpack.c.l.b16 %v833
        %v846 = vunpack.c.l.b16 %v834
        %v847 = vpack.c.b16 %v843, %v843
        %v848 = vpack.c.b16 %v844, %v844
        %v849 = vpack.c.b16 %v845, %v845
        %v850 = vpack.c.b16 %v846, %v846
        %v851 = vunpack.c.l.b16 %v847
        %v852 = vunpack.c.l.b16 %v848
        %v853 = vunpack.c.l.b16 %v849
        %v854 = vunpack.c.l.b16 %v850
        %v855 = vrot.slane %v852, 7
        %v856 = vsel %vm279, %v855, %v851
        %v857 = vrot.slane %v853, 6
        %v858 = vsel %vm282, %v857, %v856
        %v859 = vrot.slane %v854, 5
        %v860 = vsel %vm285, %v859, %v858
        %v861 = vpack.c.b16 %v860, %v860
        %862 = vrot.lane.b32.xlu0 %v861, 53
        %v863 = vpop.permute.xlu0 %862
        %vm865 = vcmask 558504
        %866 = vst.msk [vmem:[#allocation2 + $0x4] sm:$0x3] %vm865, %v863
        %v867 = vld [vmem:[#allocation2] sm:$0xff]
        %v868 = vld [vmem:[%s1] sm:$0xf]
        %s869 = scalar_lea.vmem %s1, 4
        %v870 = vld [vmem:[%s869] sm:$0xf]
        %v872 = vunpack.c.l.b16 %v867
        %v873 = vunpack.c.h.b16 %v867
        %v874 = vpack.c.b16 %v872, %v872
        %v875 = vpack.c.b16 %v873, %v873
        %876 = vrot.lane.b32.xlu0 %v874, 127
        %v877 = vpop.permute.xlu0 %876
        %878 = vrot.lane.b32.xlu0 %v875, 127
        %v879 = vpop.permute.xlu0 %878
        %v880 = vsel %vm689, %v877, %v879
        %vm881 = vcmask 64512
        %v883 = vsel %vm881, %v870, 0
        %vm885 = vcmask 1043456
        %v887 = vsel %vm885, %v880, 0
        %v890 = vsel %vm885, %v879, 0
        %892 = vmatprep.subr.bf16.mxu0 0
        %893 = vmatpush1.bf16.msra.mxu0 0
        %894 = vmatprep.subr.bf16.mxu0 0
        %895 = vmatpush1.bf16.msra.mxu0 0
        %896 = vmatprep.subr.bf16.mxu0 0
        %897 = vmatpush1.bf16.msra.mxu0 0
        %898 = vmatprep.subr.bf16.mxu0 0
        %899 = vmatpush1.bf16.msra.mxu0 0
        %900 = vmatprep.subr.bf16.mxu0 0
        %901 = vmatpush1.bf16.msra.mxu0 0
        %902 = vmatprep.subr.bf16.mxu0 0
        %903 = vmatpush1.bf16.msra.mxu0 0
        %904 = vmatprep.subr.bf16.mxu0 0
        %905 = vmatpush1.bf16.msra.mxu0 0
        %906 = vmatprep.subr.bf16.mxu0 %v890
        %907 = vmatpush1.bf16.msra.mxu0 %v887
        %908 = vmatprep.subr.bf16.mxu0 0
        %909 = vmatpush2.bf16.msra.mxu0 0
        %910 = vmatprep.subr.bf16.mxu0 0
        %911 = vmatpush2.bf16.msra.mxu0 0
        %912 = vmatprep.subr.bf16.mxu0 0
        %913 = vmatpush2.bf16.msra.mxu0 0
        %914 = vmatprep.subr.bf16.mxu0 0
        %915 = vmatpush2.bf16.msra.mxu0 0
        %916 = vmatprep.subr.bf16.mxu0 0
        %917 = vmatpush2.bf16.msra.mxu0 0
        %918 = vmatprep.subr.bf16.mxu0 0
        %919 = vmatpush2.bf16.msra.mxu0 0
        %920 = vmatprep.subr.bf16.mxu0 0
        %921 = vmatpush2.bf16.msra.mxu0 0
        %922 = vmatprep.subr.bf16.mxu0 0
        %923 = vmatpush2.bf16.msra.mxu0 0
        %924 = vmatprep.mubr.bf16.mxu0 0
        %925 = vmatmul.mubr.bf16.gmra.mxu0 %v883
        %v926 = vpop.f32.mrf.mxu0
        %v927 = vadd.f32 0.0, %v926
        %v928 = vpop.f32.mrf.mxu0
        %v929 = vadd.f32 0.0, %v928
        %v930 = vpop.f32.mrf.mxu0
        %v931 = vpop.f32.mrf.mxu0
        %932 = vdwg.mxu0
        %v934 = vsel %vm881, %v868, 0
        %v937 = vsel %vm885, %v874, 0
        %v940 = vsel %vm885, %v875, 0
        %942 = vmatprep.subr.bf16.mxu0 0
        %943 = vmatpush1.bf16.msra.mxu0 0
        %944 = vmatprep.subr.bf16.mxu0 0
        %945 = vmatpush1.bf16.msra.mxu0 0
        %946 = vmatprep.subr.bf16.mxu0 0
        %947 = vmatpush1.bf16.msra.mxu0 0
        %948 = vmatprep.subr.bf16.mxu0 0
        %949 = vmatpush1.bf16.msra.mxu0 0
        %950 = vmatprep.subr.bf16.mxu0 0
        %951 = vmatpush1.bf16.msra.mxu0 0
        %952 = vmatprep.subr.bf16.mxu0 0
        %953 = vmatpush1.bf16.msra.mxu0 0
        %954 = vmatprep.subr.bf16.mxu0 0
        %955 = vmatpush1.bf16.msra.mxu0 0
        %956 = vmatprep.subr.bf16.mxu0 %v940
        %957 = vmatpush1.bf16.msra.mxu0 %v937
        %958 = vmatprep.subr.bf16.mxu0 0
        %959 = vmatpush2.bf16.msra.mxu0 0
        %960 = vmatprep.subr.bf16.mxu0 0
        %961 = vmatpush2.bf16.msra.mxu0 0
        %962 = vmatprep.subr.bf16.mxu0 0
        %963 = vmatpush2.bf16.msra.mxu0 0
        %964 = vmatprep.subr.bf16.mxu0 0
        %965 = vmatpush2.bf16.msra.mxu0 0
        %966 = vmatprep.subr.bf16.mxu0 0
        %967 = vmatpush2.bf16.msra.mxu0 0
        %968 = vmatprep.subr.bf16.mxu0 0
        %969 = vmatpush2.bf16.msra.mxu0 0
        %970 = vmatprep.subr.bf16.mxu0 0
        %971 = vmatpush2.bf16.msra.mxu0 0
        %972 = vmatprep.subr.bf16.mxu0 0
        %973 = vmatpush2.bf16.msra.mxu0 0
        %974 = vmatprep.mubr.bf16.mxu0 0
        %975 = vmatmul.mubr.bf16.gmra.mxu0 %v934
        %v976 = vpop.f32.mrf.mxu0
        %v977 = vadd.f32 %v927, %v976
        %v978 = vpop.f32.mrf.mxu0
        %v979 = vadd.f32 %v929, %v978
        %v980 = vpop.f32.mrf.mxu0
        %v981 = vpop.f32.mrf.mxu0
        %982 = vdwg.mxu0
        %s983 = scalar_lea.vmem %s1, 8
        %v984 = vld [vmem:[%s983] sm:$0xf]
        %985 = vrot.lane.b32.xlu0 %v874, 126
        %v986 = vpop.permute.xlu0 %985
        %987 = vrot.lane.b32.xlu0 %v875, 126
        %v988 = vpop.permute.xlu0 %987
        %vm989 = vcmask 1031168
        %v990 = vsel %vm989, %v986, %v988
        %v992 = vsel %vm881, %v984, 0
        %v995 = vsel %vm885, %v990, 0
        %v998 = vsel %vm885, %v988, 0
        %1000 = vmatprep.subr.bf16.mxu0 0
        %1001 = vmatpush1.bf16.msra.mxu0 0
        %1002 = vmatprep.subr.bf16.mxu0 0
        %1003 = vmatpush1.bf16.msra.mxu0 0
        %1004 = vmatprep.subr.bf16.mxu0 0
        %1005 = vmatpush1.bf16.msra.mxu0 0
        %1006 = vmatprep.subr.bf16.mxu0 0
        %1007 = vmatpush1.bf16.msra.mxu0 0
        %1008 = vmatprep.subr.bf16.mxu0 0
        %1009 = vmatpush1.bf16.msra.mxu0 0
        %1010 = vmatprep.subr.bf16.mxu0 0
        %1011 = vmatpush1.bf16.msra.mxu0 0
        %1012 = vmatprep.subr.bf16.mxu0 0
        %1013 = vmatpush1.bf16.msra.mxu0 0
        %1014 = vmatprep.subr.bf16.mxu0 %v998
        %1015 = vmatpush1.bf16.msra.mxu0 %v995
        %1016 = vmatprep.subr.bf16.mxu0 0
        %1017 = vmatpush2.bf16.msra.mxu0 0
        %1018 = vmatprep.subr.bf16.mxu0 0
        %1019 = vmatpush2.bf16.msra.mxu0 0
        %1020 = vmatprep.subr.bf16.mxu0 0
        %1021 = vmatpush2.bf16.msra.mxu0 0
        %1022 = vmatprep.subr.bf16.mxu0 0
        %1023 = vmatpush2.bf16.msra.mxu0 0
        %1024 = vmatprep.subr.bf16.mxu0 0
        %1025 = vmatpush2.bf16.msra.mxu0 0
        %1026 = vmatprep.subr.bf16.mxu0 0
        %1027 = vmatpush2.bf16.msra.mxu0 0
        %1028 = vmatprep.subr.bf16.mxu0 0
        %1029 = vmatpush2.bf16.msra.mxu0 0
        %1030 = vmatprep.subr.bf16.mxu0 0
        %1031 = vmatpush2.bf16.msra.mxu0 0
        %1032 = vmatprep.mubr.bf16.mxu0 0
        %1033 = vmatmul.mubr.bf16.gmra.mxu0 %v992
        %v1034 = vpop.f32.mrf.mxu0
        %v1035 = vadd.f32 0.0, %v1034
        %v1036 = vpop.f32.mrf.mxu0
        %v1037 = vadd.f32 0.0, %v1036
        %v1038 = vpop.f32.mrf.mxu0
        %v1039 = vpop.f32.mrf.mxu0
        %1040 = vdwg.mxu0
        %v1041 = vadd.f32 %v977, %v1035
        %v1042 = vadd.f32 %v979, %v1037
        %s1043 = scalar_lea.vmem %s1, 12
        %v1044 = vld [vmem:[%s1043] sm:$0xf]
        %1045 = vrot.lane.b32.xlu0 %v874, 110
        %v1046 = vpop.permute.xlu0 %1045
        %1047 = vrot.lane.b32.xlu0 %v875, 110
        %v1048 = vpop.permute.xlu0 %1047
        %vm1049 = vcmask 900096
        %v1050 = vsel %vm1049, %v1046, %v1048
        %v1052 = vsel %vm881, %v1044, 0
        %v1055 = vsel %vm885, %v1050, 0
        %v1058 = vsel %vm885, %v1048, 0
        %1060 = vmatprep.subr.bf16.mxu0 0
        %1061 = vmatpush1.bf16.msra.mxu0 0
        %1062 = vmatprep.subr.bf16.mxu0 0
        %1063 = vmatpush1.bf16.msra.mxu0 0
        %1064 = vmatprep.subr.bf16.mxu0 0
        %1065 = vmatpush1.bf16.msra.mxu0 0
        %1066 = vmatprep.subr.bf16.mxu0 0
        %1067 = vmatpush1.bf16.msra.mxu0 0
        %1068 = vmatprep.subr.bf16.mxu0 0
        %1069 = vmatpush1.bf16.msra.mxu0 0
        %1070 = vmatprep.subr.bf16.mxu0 0
        %1071 = vmatpush1.bf16.msra.mxu0 0
        %1072 = vmatprep.subr.bf16.mxu0 0
        %1073 = vmatpush1.bf16.msra.mxu0 0
        %1074 = vmatprep.subr.bf16.mxu0 %v1058
        %1075 = vmatpush1.bf16.msra.mxu0 %v1055
        %1076 = vmatprep.subr.bf16.mxu0 0
        %1077 = vmatpush2.bf16.msra.mxu0 0
        %1078 = vmatprep.subr.bf16.mxu0 0
        %1079 = vmatpush2.bf16.msra.mxu0 0
        %1080 = vmatprep.subr.bf16.mxu0 0
        %1081 = vmatpush2.bf16.msra.mxu0 0
        %1082 = vmatprep.subr.bf16.mxu0 0
        %1083 = vmatpush2.bf16.msra.mxu0 0
        %1084 = vmatprep.subr.bf16.mxu0 0
        %1085 = vmatpush2.bf16.msra.mxu0 0
        %1086 = vmatprep.subr.bf16.mxu0 0
        %1087 = vmatpush2.bf16.msra.mxu0 0
        %1088 = vmatprep.subr.bf16.mxu0 0
        %1089 = vmatpush2.bf16.msra.mxu0 0
        %1090 = vmatprep.subr.bf16.mxu0 0
        %1091 = vmatpush2.bf16.msra.mxu0 0
        %1092 = vmatprep.mubr.bf16.mxu0 0
        %1093 = vmatmul.mubr.bf16.gmra.mxu0 %v1052
        %v1094 = vpop.f32.mrf.mxu0
        %v1095 = vadd.f32 0.0, %v1094
        %v1096 = vpop.f32.mrf.mxu0
        %v1097 = vadd.f32 0.0, %v1096
        %v1098 = vpop.f32.mrf.mxu0
        %v1099 = vpop.f32.mrf.mxu0
        %1100 = vdwg.mxu0
        %v1101 = vadd.f32 %v1041, %v1095
        %v1102 = vadd.f32 %v1042, %v1097
        %s1103 = scalar_lea.vmem %s1, 16
        %v1104 = vld [vmem:[%s1103] sm:$0xf]
        %1105 = vrot.lane.b32.xlu0 %v874, 109
        %v1106 = vpop.permute.xlu0 %1105
        %1107 = vrot.lane.b32.xlu0 %v875, 109
        %v1108 = vpop.permute.xlu0 %1107
        %vm1109 = vcmask 891904
        %v1110 = vsel %vm1109, %v1106, %v1108
        %v1112 = vsel %vm881, %v1104, 0
        %v1115 = vsel %vm885, %v1110, 0
        %v1118 = vsel %vm885, %v1108, 0
        %1120 = vmatprep.subr.bf16.mxu0 0
        %1121 = vmatpush1.bf16.msra.mxu0 0
        %1122 = vmatprep.subr.bf16.mxu0 0
        %1123 = vmatpush1.bf16.msra.mxu0 0
        %1124 = vmatprep.subr.bf16.mxu0 0
        %1125 = vmatpush1.bf16.msra.mxu0 0
        %1126 = vmatprep.subr.bf16.mxu0 0
        %1127 = vmatpush1.bf16.msra.mxu0 0
        %1128 = vmatprep.subr.bf16.mxu0 0
        %1129 = vmatpush1.bf16.msra.mxu0 0
        %1130 = vmatprep.subr.bf16.mxu0 0
        %1131 = vmatpush1.bf16.msra.mxu0 0
        %1132 = vmatprep.subr.bf16.mxu0 0
        %1133 = vmatpush1.bf16.msra.mxu0 0
        %1134 = vmatprep.subr.bf16.mxu0 %v1118
        %1135 = vmatpush1.bf16.msra.mxu0 %v1115
        %1136 = vmatprep.subr.bf16.mxu0 0
        %1137 = vmatpush2.bf16.msra.mxu0 0
        %1138 = vmatprep.subr.bf16.mxu0 0
        %1139 = vmatpush2.bf16.msra.mxu0 0
        %1140 = vmatprep.subr.bf16.mxu0 0
        %1141 = vmatpush2.bf16.msra.mxu0 0
        %1142 = vmatprep.subr.bf16.mxu0 0
        %1143 = vmatpush2.bf16.msra.mxu0 0
        %1144 = vmatprep.subr.bf16.mxu0 0
        %1145 = vmatpush2.bf16.msra.mxu0 0
        %1146 = vmatprep.subr.bf16.mxu0 0
        %1147 = vmatpush2.bf16.msra.mxu0 0
        %1148 = vmatprep.subr.bf16.mxu0 0
        %1149 = vmatpush2.bf16.msra.mxu0 0
        %1150 = vmatprep.subr.bf16.mxu0 0
        %1151 = vmatpush2.bf16.msra.mxu0 0
        %1152 = vmatprep.mubr.bf16.mxu0 0
        %1153 = vmatmul.mubr.bf16.gmra.mxu0 %v1112
        %v1154 = vpop.f32.mrf.mxu0
        %v1155 = vadd.f32 0.0, %v1154
        %v1156 = vpop.f32.mrf.mxu0
        %v1157 = vadd.f32 0.0, %v1156
        %v1158 = vpop.f32.mrf.mxu0
        %v1159 = vpop.f32.mrf.mxu0
        %1160 = vdwg.mxu0
        %v1161 = vadd.f32 %v1101, %v1155
        %v1162 = vadd.f32 %v1102, %v1157
        %s1163 = scalar_lea.vmem %s1, 20
        %v1164 = vld [vmem:[%s1163] sm:$0xf]
        %1165 = vrot.lane.b32.xlu0 %v874, 108
        %v1166 = vpop.permute.xlu0 %1165
        %1167 = vrot.lane.b32.xlu0 %v875, 108
        %v1168 = vpop.permute.xlu0 %1167
        %vm1169 = vcmask 883712
        %v1170 = vsel %vm1169, %v1166, %v1168
        %v1172 = vsel %vm881, %v1164, 0
        %v1175 = vsel %vm885, %v1170, 0
        %v1178 = vsel %vm885, %v1168, 0
        %1180 = vmatprep.subr.bf16.mxu0 0
        %1181 = vmatpush1.bf16.msra.mxu0 0
        %1182 = vmatprep.subr.bf16.mxu0 0
        %1183 = vmatpush1.bf16.msra.mxu0 0
        %1184 = vmatprep.subr.bf16.mxu0 0
        %1185 = vmatpush1.bf16.msra.mxu0 0
        %1186 = vmatprep.subr.bf16.mxu0 0
        %1187 = vmatpush1.bf16.msra.mxu0 0
        %1188 = vmatprep.subr.bf16.mxu0 0
        %1189 = vmatpush1.bf16.msra.mxu0 0
        %1190 = vmatprep.subr.bf16.mxu0 0
        %1191 = vmatpush1.bf16.msra.mxu0 0
        %1192 = vmatprep.subr.bf16.mxu0 0
        %1193 = vmatpush1.bf16.msra.mxu0 0
        %1194 = vmatprep.subr.bf16.mxu0 %v1178
        %1195 = vmatpush1.bf16.msra.mxu0 %v1175
        %1196 = vmatprep.subr.bf16.mxu0 0
        %1197 = vmatpush2.bf16.msra.mxu0 0
        %1198 = vmatprep.subr.bf16.mxu0 0
        %1199 = vmatpush2.bf16.msra.mxu0 0
        %1200 = vmatprep.subr.bf16.mxu0 0
        %1201 = vmatpush2.bf16.msra.mxu0 0
        %1202 = vmatprep.subr.bf16.mxu0 0
        %1203 = vmatpush2.bf16.msra.mxu0 0
        %1204 = vmatprep.subr.bf16.mxu0 0
        %1205 = vmatpush2.bf16.msra.mxu0 0
        %1206 = vmatprep.subr.bf16.mxu0 0
        %1207 = vmatpush2.bf16.msra.mxu0 0
        %1208 = vmatprep.subr.bf16.mxu0 0
        %1209 = vmatpush2.bf16.msra.mxu0 0
        %1210 = vmatprep.subr.bf16.mxu0 0
        %1211 = vmatpush2.bf16.msra.mxu0 0
        %1212 = vmatprep.mubr.bf16.mxu0 0
        %1213 = vmatmul.mubr.bf16.gmra.mxu0 %v1172
        %v1214 = vpop.f32.mrf.mxu0
        %v1215 = vadd.f32 0.0, %v1214
        %v1216 = vpop.f32.mrf.mxu0
        %v1217 = vadd.f32 0.0, %v1216
        %v1218 = vpop.f32.mrf.mxu0
        %v1219 = vpop.f32.mrf.mxu0
        %1220 = vdwg.mxu0
        %v1221 = vadd.f32 %v1161, %v1215
        %v1222 = vadd.f32 %v1162, %v1217
        %s1223 = scalar_lea.vmem %s1, 24
        %v1224 = vld [vmem:[%s1223] sm:$0xf]
        %1225 = vrot.lane.b32.xlu0 %v874, 92
        %v1226 = vpop.permute.xlu0 %1225
        %1227 = vrot.lane.b32.xlu0 %v875, 92
        %v1228 = vpop.permute.xlu0 %1227
        %vm1229 = vcmask 752640
        %v1230 = vsel %vm1229, %v1226, %v1228
        %v1232 = vsel %vm881, %v1224, 0
        %v1235 = vsel %vm885, %v1230, 0
        %v1238 = vsel %vm885, %v1228, 0
        %1240 = vmatprep.subr.bf16.mxu0 0
        %1241 = vmatpush1.bf16.msra.mxu0 0
        %1242 = vmatprep.subr.bf16.mxu0 0
        %1243 = vmatpush1.bf16.msra.mxu0 0
        %1244 = vmatprep.subr.bf16.mxu0 0
        %1245 = vmatpush1.bf16.msra.mxu0 0
        %1246 = vmatprep.subr.bf16.mxu0 0
        %1247 = vmatpush1.bf16.msra.mxu0 0
        %1248 = vmatprep.subr.bf16.mxu0 0
        %1249 = vmatpush1.bf16.msra.mxu0 0
        %1250 = vmatprep.subr.bf16.mxu0 0
        %1251 = vmatpush1.bf16.msra.mxu0 0
        %1252 = vmatprep.subr.bf16.mxu0 0
        %1253 = vmatpush1.bf16.msra.mxu0 0
        %1254 = vmatprep.subr.bf16.mxu0 %v1238
        %1255 = vmatpush1.bf16.msra.mxu0 %v1235
        %1256 = vmatprep.subr.bf16.mxu0 0
        %1257 = vmatpush2.bf16.msra.mxu0 0
        %1258 = vmatprep.subr.bf16.mxu0 0
        %1259 = vmatpush2.bf16.msra.mxu0 0
        %1260 = vmatprep.subr.bf16.mxu0 0
        %1261 = vmatpush2.bf16.msra.mxu0 0
        %1262 = vmatprep.subr.bf16.mxu0 0
        %1263 = vmatpush2.bf16.msra.mxu0 0
        %1264 = vmatprep.subr.bf16.mxu0 0
        %1265 = vmatpush2.bf16.msra.mxu0 0
        %1266 = vmatprep.subr.bf16.mxu0 0
        %1267 = vmatpush2.bf16.msra.mxu0 0
        %1268 = vmatprep.subr.bf16.mxu0 0
        %1269 = vmatpush2.bf16.msra.mxu0 0
        %1270 = vmatprep.subr.bf16.mxu0 0
        %1271 = vmatpush2.bf16.msra.mxu0 0
        %1272 = vmatprep.mubr.bf16.mxu0 0
        %1273 = vmatmul.mubr.bf16.gmra.mxu0 %v1232
        %v1274 = vpop.f32.mrf.mxu0
        %v1275 = vadd.f32 0.0, %v1274
        %v1276 = vpop.f32.mrf.mxu0
        %v1277 = vadd.f32 0.0, %v1276
        %v1278 = vpop.f32.mrf.mxu0
        %v1279 = vpop.f32.mrf.mxu0
        %1280 = vdwg.mxu0
        %v1281 = vadd.f32 %v1221, %v1275
        %v1282 = vadd.f32 %v1222, %v1277
        %s1283 = scalar_lea.vmem %s1, 28
        %v1284 = vld [vmem:[%s1283] sm:$0xf]
        %1285 = vrot.lane.b32.xlu0 %v874, 91
        %v1286 = vpop.permute.xlu0 %1285
        %1287 = vrot.lane.b32.xlu0 %v875, 91
        %v1288 = vpop.permute.xlu0 %1287
        %vm1289 = vcmask 744448
        %v1290 = vsel %vm1289, %v1286, %v1288
        %v1292 = vsel %vm881, %v1284, 0
        %v1295 = vsel %vm885, %v1290, 0
        %v1298 = vsel %vm885, %v1288, 0
        %1300 = vmatprep.subr.bf16.mxu0 0
        %1301 = vmatpush1.bf16.msra.mxu0 0
        %1302 = vmatprep.subr.bf16.mxu0 0
        %1303 = vmatpush1.bf16.msra.mxu0 0
        %1304 = vmatprep.subr.bf16.mxu0 0
        %1305 = vmatpush1.bf16.msra.mxu0 0
        %1306 = vmatprep.subr.bf16.mxu0 0
        %1307 = vmatpush1.bf16.msra.mxu0 0
        %1308 = vmatprep.subr.bf16.mxu0 0
        %1309 = vmatpush1.bf16.msra.mxu0 0
        %1310 = vmatprep.subr.bf16.mxu0 0
        %1311 = vmatpush1.bf16.msra.mxu0 0
        %1312 = vmatprep.subr.bf16.mxu0 0
        %1313 = vmatpush1.bf16.msra.mxu0 0
        %1314 = vmatprep.subr.bf16.mxu0 %v1298
        %1315 = vmatpush1.bf16.msra.mxu0 %v1295
        %1316 = vmatprep.subr.bf16.mxu0 0
        %1317 = vmatpush2.bf16.msra.mxu0 0
        %1318 = vmatprep.subr.bf16.mxu0 0
        %1319 = vmatpush2.bf16.msra.mxu0 0
        %1320 = vmatprep.subr.bf16.mxu0 0
        %1321 = vmatpush2.bf16.msra.mxu0 0
        %1322 = vmatprep.subr.bf16.mxu0 0
        %1323 = vmatpush2.bf16.msra.mxu0 0
        %1324 = vmatprep.subr.bf16.mxu0 0
        %1325 = vmatpush2.bf16.msra.mxu0 0
        %1326 = vmatprep.subr.bf16.mxu0 0
        %1327 = vmatpush2.bf16.msra.mxu0 0
        %1328 = vmatprep.subr.bf16.mxu0 0
        %1329 = vmatpush2.bf16.msra.mxu0 0
        %1330 = vmatprep.subr.bf16.mxu0 0
        %1331 = vmatpush2.bf16.msra.mxu0 0
        %1332 = vmatprep.mubr.bf16.mxu0 0
        %1333 = vmatmul.mubr.bf16.gmra.mxu0 %v1292
        %v1334 = vpop.f32.mrf.mxu0
        %v1335 = vadd.f32 0.0, %v1334
        %v1336 = vpop.f32.mrf.mxu0
        %v1337 = vadd.f32 0.0, %v1336
        %v1338 = vpop.f32.mrf.mxu0
        %v1339 = vpop.f32.mrf.mxu0
        %1340 = vdwg.mxu0
        %v1341 = vadd.f32 %v1281, %v1335
        %v1342 = vadd.f32 %v1282, %v1337
        %s1343 = scalar_lea.vmem %s1, 32
        %v1344 = vld [vmem:[%s1343] sm:$0xf]
        %1345 = vrot.lane.b32.xlu0 %v874, 90
        %v1346 = vpop.permute.xlu0 %1345
        %1347 = vrot.lane.b32.xlu0 %v875, 90
        %v1348 = vpop.permute.xlu0 %1347
        %vm1349 = vcmask 736256
        %v1350 = vsel %vm1349, %v1346, %v1348
        %v1352 = vsel %vm881, %v1344, 0
        %v1355 = vsel %vm885, %v1350, 0
        %v1358 = vsel %vm885, %v1348, 0
        %1360 = vmatprep.subr.bf16.mxu0 0
        %1361 = vmatpush1.bf16.msra.mxu0 0
        %1362 = vmatprep.subr.bf16.mxu0 0
        %1363 = vmatpush1.bf16.msra.mxu0 0
        %1364 = vmatprep.subr.bf16.mxu0 0
        %1365 = vmatpush1.bf16.msra.mxu0 0
        %1366 = vmatprep.subr.bf16.mxu0 0
        %1367 = vmatpush1.bf16.msra.mxu0 0
        %1368 = vmatprep.subr.bf16.mxu0 0
        %1369 = vmatpush1.bf16.msra.mxu0 0
        %1370 = vmatprep.subr.bf16.mxu0 0
        %1371 = vmatpush1.bf16.msra.mxu0 0
        %1372 = vmatprep.subr.bf16.mxu0 0
        %1373 = vmatpush1.bf16.msra.mxu0 0
        %1374 = vmatprep.subr.bf16.mxu0 %v1358
        %1375 = vmatpush1.bf16.msra.mxu0 %v1355
        %1376 = vmatprep.subr.bf16.mxu0 0
        %1377 = vmatpush2.bf16.msra.mxu0 0
        %1378 = vmatprep.subr.bf16.mxu0 0
        %1379 = vmatpush2.bf16.msra.mxu0 0
        %1380 = vmatprep.subr.bf16.mxu0 0
        %1381 = vmatpush2.bf16.msra.mxu0 0
        %1382 = vmatprep.subr.bf16.mxu0 0
        %1383 = vmatpush2.bf16.msra.mxu0 0
        %1384 = vmatprep.subr.bf16.mxu0 0
        %1385 = vmatpush2.bf16.msra.mxu0 0
        %1386 = vmatprep.subr.bf16.mxu0 0
        %1387 = vmatpush2.bf16.msra.mxu0 0
        %1388 = vmatprep.subr.bf16.mxu0 0
        %1389 = vmatpush2.bf16.msra.mxu0 0
        %1390 = vmatprep.subr.bf16.mxu0 0
        %1391 = vmatpush2.bf16.msra.mxu0 0
        %1392 = vmatprep.mubr.bf16.mxu0 0
        %1393 = vmatmul.mubr.bf16.gmra.mxu0 %v1352
        %v1394 = vpop.f32.mrf.mxu0
        %v1395 = vadd.f32 0.0, %v1394
        %v1396 = vpop.f32.mrf.mxu0
        %v1397 = vadd.f32 0.0, %v1396
        %v1398 = vpop.f32.mrf.mxu0
        %v1399 = vpop.f32.mrf.mxu0
        %1400 = vdwg.mxu0
        %v1401 = vadd.f32 %v1341, %v1395
        %v1402 = vadd.f32 %v1342, %v1397
        %v1403 = vld [vmem:[%s2] sm:$0xff]
        %1405 = vset.pattern.permute.xlu0 0
        %1406 = vperm.xlu0 %1405, %v1403
        %v1407 = vpop.permute.xlu0 %1406
        %v1409 = vmul.f32 %v1401, %v1407
        %v1410 = vmul.f32 %v1402, %v1407
        %v1411 = vld [vmem:[%s3] sm:$0xff]
        %1413 = vset.pattern.permute.xlu0 0
        %1414 = vperm.xlu0 %1413, %v1411
        %v1415 = vpop.permute.xlu0 %1414
        %v1417 = vadd.f32 %v1409, %v1415
        %v1418 = vadd.f32 %v1410, %v1415
        %v1419 = vmax.f32 %v1417, 0.0
        %v1420 = vmax.f32 %v1418, 0.0
        %1422 = vrot.lane.b32.xlu0 %v1419, 126
        %v1423 = vpop.permute.xlu0 %1422
        %1425 = vrot.lane.b32.xlu0 %v1419, 124
        %v1426 = vpop.permute.xlu0 %1425
        %1428 = vrot.lane.b32.xlu0 %v1419, 122
        %v1429 = vpop.permute.xlu0 %1428
        %1431 = vrot.lane.b32.xlu0 %v1419, 120
        %v1432 = vpop.permute.xlu0 %1431
        %1434 = vrot.lane.b32.xlu0 %v1419, 118
        %v1435 = vpop.permute.xlu0 %1434
        %1437 = vrot.lane.b32.xlu0 %v1419, 116
        %v1438 = vpop.permute.xlu0 %1437
        %1441 = vrot.lane.b32.xlu0 %v1419, 114
        %v1442 = vpop.permute.xlu0 %1441
        %1443 = vrot.lane.b32.xlu0 %v1420, 114
        %v1444 = vpop.permute.xlu0 %1443
        %vm1445 = vcmask 932864
        %v1446 = vsel %vm1445, %v1442, %v1444
        %vm1448 = vcmask 130048
        %v1449 = vsel %vm1448, %v1419, %v1423
        %vm1450 = vcmask 261120
        %v1451 = vsel %vm1450, %v1449, %v1426
        %vm1452 = vcmask 392192
        %v1453 = vsel %vm1452, %v1451, %v1429
        %vm1454 = vcmask 523264
        %v1455 = vsel %vm1454, %v1453, %v1432
        %vm1456 = vcmask 654336
        %v1457 = vsel %vm1456, %v1455, %v1435
        %vm1458 = vcmask 785408
        %v1459 = vsel %vm1458, %v1457, %v1438
        %vm1460 = vcmask 916480
        %v1461 = vsel %vm1460, %v1459, %v1446
        %1462 = vst [vmem:[%s229] sm:$0xff] %v1461
        %s1463 = sand.u32 %s132, 1
        %s1464 = scalar_lea.sflag [#allocation5], %s1463
        %s1465 = sand.u32 %s132, 1
        %s1466 = smul.addr %s1465, 8
        %s1467 = scalar_lea.vmem [#allocation6], %s1466
        // Predicated region
        $region41: #{tpu_custom_call.1} parent=35 // pred_check
          %p1468 = pneg %p142
        $region42: #{tpu_custom_call.1} parent=35 // pred_check_branch
          %1470 = sbr.rel (%p1468) target = $region44
        $region43: #{tpu_custom_call.1} parent=35 // pred_region
          %s1472 = ssub.s32 128, 128
          %1473 = vsyncadd %s1464, %s1472
          %s1474 = smul.addr %s25, 2
          %s1475 = sadd.s32 %s26, %s1474
          %s1476 = smul.addr %s1475, 128
          %s1477 = scalar_lea.hbm %s4, %s1476
          %s1479 = sshll.u32 %s1467, 4
          %s1480 = int_to_ptr.vmem [resolvable:$true] %s1479
          %1482 = dma.vmem_to_hbm [thread:$0]  %s1480, 128, %s1477, %s1464
        $region44: #{tpu_custom_call.1} parent=35 // pred_fallthru
          _
      $region36: #{tpu_custom_call.1} parent=5 // pred_fallthru
        _
      %p1483 = scmp.le.s32.totalorder 2, %s16
      // Predicated region
      $region45: #{tpu_custom_call.1} parent=5 // pred_check
        %p1484 = pneg %p1483
      $region46: #{tpu_custom_call.1} parent=5 // pred_check_branch
        %1486 = sbr.rel (%p1484) target = $region48
      $region47: #{tpu_custom_call.1} parent=5 // pred_region
        %s1487 = ssub.s32 %s16, 2
        // Predicated region
        $region49: #{tpu_custom_call.1} parent=47 // pred_check
          %p1488 = pneg %p148
        $region50: #{tpu_custom_call.1} parent=47 // pred_check_branch
          %1490 = sbr.rel (%p1488) target = $region52
        $region51: #{tpu_custom_call.1} parent=47 // pred_region
          %s1491 = sand.u32 %s133, 1
          %s1492 = scalar_lea.sflag [#allocation5], %s1491
          %s1493 = sand.u32 %s133, 1
          %s1494 = smul.addr %s1493, 8
          %s1495 = scalar_lea.vmem [#allocation6], %s1494
          %1496 = dma.done %s1492, 128
        $region52: #{tpu_custom_call.1} parent=47 // pred_fallthru
          _
      $region48: #{tpu_custom_call.1} parent=5 // pred_fallthru
        _
    $region6: #{tpu_custom_call.1} parent=1 // loop_footer
      %s20 = sadd.s32 1, %s16
    $region7: #{tpu_custom_call.1} parent=1 // loop_footer_branch
      %15 = sbr.rel target = $region3
    $region8: #{tpu_custom_call.1} parent=1 // loop_exit
      _
    %1497 = vsyncpa [#allocation4], 1
    %s1498 = scalar_lea.sflag [#allocation4], 1
    %1499 = vsyncpa %s1498, 1
    %1500 = vsyncpa [#allocation5], 1
    %s1501 = scalar_lea.sflag [#allocation5], 1
    %1502 = vsyncpa %s1501, 1

</llo_original>
